<compile_context>
chip_gen: v7x
topology: tpu7x:2x2x1
jax: 0.10.0
libtpu: 0.0.40
codegen_flags: <defaults>
</compile_context>

<pallas_src>
import jax
import jax.numpy as jnp
from jax.experimental import pallas as pl
from jax.experimental.pallas import tpu as pltpu

EPS = 1e-5
LANE = 128

# Hidden sizes from the module: 256, 256, 512.
_N1, _N2, _N3 = 256, 256, 512
# Lane offsets inside the packed per-feature vector array
# [g1 | be1 | g2 | be2 | g3 | be3 | b5(pad->128)].
_OFF_G1 = 0
_OFF_BE1 = _OFF_G1 + _N1
_OFF_G2 = _OFF_BE1 + _N1
_OFF_BE2 = _OFF_G2 + _N2
_OFF_G3 = _OFF_BE2 + _N2
_OFF_BE3 = _OFF_G3 + _N3
_OFF_B5 = _OFF_BE3 + _N3
_VEC_LEN = _OFF_B5 + LANE          # 2176 = 17 * 128


def _round_up(n, m):
    return ((n + m - 1) // m) * m


def _mlp_kernel(x_ref, w1_ref, w2_ref, w3_hbm, w5_hbm, vec_ref, out_ref,
                w3_vmem, w5_vmem, dma_sem):
    """Whole forward fused in one kernel invocation (grid=())."""
    # Kick off the w3 / w5 weight fetches immediately so they overlap the
    # layer-1 / layer-2 compute (the Pallas prologue only DMAs the VMEM-spec'd
    # inputs: x, w1, w2 and the packed per-feature vector).
    w3_cp = pltpu.make_async_copy(w3_hbm, w3_vmem, dma_sem.at[0])
    w5_cp = pltpu.make_async_copy(w5_hbm, w5_vmem, dma_sem.at[1])
    w3_cp.start()
    w5_cp.start()

    def bn_sigmoid(h, g, be):
        # Training-mode BatchNorm1d: batch statistics over axis=0, biased
        # variance, folded into one per-feature scale/shift so the (B, N)
        # apply is only mul+add.  var = E[h^2] - mean^2 avoids the extra
        # (B, N) centering pass.
        mean = jnp.mean(h, axis=0, keepdims=True)                  # (1, N)
        mean_sq = jnp.mean(h * h, axis=0, keepdims=True)           # (1, N)
        var = mean_sq - mean * mean
        scale = jax.lax.rsqrt(var + EPS) * g                       # (1, N)
        shift = be - mean * scale                                  # (1, N)
        z = h * scale + shift                                      # (B, N)
        # sigmoid(z) == 0.5*tanh(0.5*z) + 0.5 -> transcendental on the EUP.
        # Cast to bf16 here: the only consumer is the next bf16 MXU matmul.
        return (0.5 * jnp.tanh(0.5 * z) + 0.5).astype(jnp.bfloat16)

    # Per-feature parameters: one packed f32 array, lane-aligned static slices.
    g1 = vec_ref[:, _OFF_G1:_OFF_G1 + _N1]
    be1 = vec_ref[:, _OFF_BE1:_OFF_BE1 + _N1]
    g2 = vec_ref[:, _OFF_G2:_OFF_G2 + _N2]
    be2 = vec_ref[:, _OFF_BE2:_OFF_BE2 + _N2]
    g3 = vec_ref[:, _OFF_G3:_OFF_G3 + _N3]
    be3 = vec_ref[:, _OFF_BE3:_OFF_BE3 + _N3]
    b5 = vec_ref[:, _OFF_B5:_OFF_B5 + LANE]

    # Layer 1 (linear bias dropped: exactly cancelled by training-mode BN).
    h1 = jnp.dot(x_ref[...], w1_ref[...], preferred_element_type=jnp.float32)
    a1 = bn_sigmoid(h1, g1, be1)

    # Layer 2.
    h2 = jnp.dot(a1, w2_ref[...], preferred_element_type=jnp.float32)
    a2 = bn_sigmoid(h2, g2, be2)

    # Layer 3: its weights have been in flight since kernel entry.
    w3_cp.wait()
    h3 = jnp.dot(a2, w3_vmem[...], preferred_element_type=jnp.float32)
    a3 = bn_sigmoid(h3, g3, be3)

    # Layer 5 (output): bias kept (no BN after it).  Lane-dense (B, 128) store;
    # padded class columns are sliced off in the wrapper.
    w5_cp.wait()
    out_ref[...] = jnp.dot(a3, w5_vmem[...],
                           preferred_element_type=jnp.float32) + b5


def mlp_forward(x, packed):
    """x: [B, in_dim] float32 -> logits [B, classes] float32."""
    B, in_dim = x.shape
    k1_pad = packed["w1"].shape[0]
    n5_pad = packed["w5"].shape[1]

    # Zero-pad the first contraction dim (138 -> 256): padded columns multiply
    # padded zero weight rows, so the math is unchanged.  Cast to bf16 once
    # here so the kernel feeds the MXU straight from the input ref.
    x_pad = jnp.pad(x, ((0, 0), (0, k1_pad - in_dim))).astype(jnp.bfloat16)

    vmem = pltpu.MemorySpace.VMEM
    args = (x_pad, packed["w1"], packed["w2"], packed["w3"], packed["w5"],
            packed["vec"])
    out_pad = pl.pallas_call(
        _mlp_kernel,
        out_shape=jax.ShapeDtypeStruct((B, n5_pad), jnp.float32),
        in_specs=[
            pl.BlockSpec(memory_space=vmem),    # x (bf16, padded)
            pl.BlockSpec(memory_space=vmem),    # w1
            pl.BlockSpec(memory_space=vmem),    # w2
            pl.BlockSpec(memory_space=pl.ANY),  # w3: manual overlapped DMA
            pl.BlockSpec(memory_space=pl.ANY),  # w5: manual overlapped DMA
            pl.BlockSpec(memory_space=vmem),    # packed per-feature vectors
        ],
        out_specs=pl.BlockSpec(memory_space=vmem),
        scratch_shapes=[
            pltpu.VMEM(packed["w3"].shape, jnp.bfloat16),
            pltpu.VMEM(packed["w5"].shape, jnp.bfloat16),
            pltpu.SemaphoreType.DMA((2,)),
        ],
    )(*args)
    return out_pad[:, :packed["classes"]]


def init_params(key, in_dim=138, classes=2):
    """Master f32 params mirroring nn.Linear (U(+-1/sqrt(fan_in))) and
    nn.BatchNorm1d (weight=1, bias=0).  Weights stored as [in, out].
    b1/b2/b3 are kept here only for the reference implementations."""
    dims = [(in_dim, _N1), (_N1, _N2), (_N2, _N3), (_N3, classes)]
    names = ["1", "2", "3", "5"]
    params = {}
    for (fan_in, fan_out), n in zip(dims, names):
        key, kw, kb = jax.random.split(key, 3)
        bound = 1.0 / jnp.sqrt(jnp.float32(fan_in))
        params[f"w{n}"] = jax.random.uniform(
            kw, (fan_in, fan_out), jnp.float32, -bound, bound)
        params[f"b{n}"] = jax.random.uniform(
            kb, (1, fan_out), jnp.float32, -bound, bound)
    for n, d in zip(["1", "2", "3"], [_N1, _N2, _N3]):
        params[f"g{n}"] = jnp.ones((1, d), jnp.float32)     # BN weight
        params[f"be{n}"] = jnp.zeros((1, d), jnp.float32)   # BN bias
    return params


def pack_params(p, in_dim, classes):
    """Kernel-side params: bf16 weights (K of w1 lane-padded, w5 lane-dense),
    all per-feature vectors packed into one f32 array.  b1/b2/b3 dropped —
    exactly cancelled by training-mode BatchNorm."""
    k1_pad = _round_up(in_dim, LANE)
    n5_pad = _round_up(classes, LANE)
    assert n5_pad == LANE, "packed-vector layout assumes classes <= 128"
    b5_pad = jnp.pad(p["b5"], ((0, 0), (0, n5_pad - classes)))
    vec = jnp.concatenate(
        [p["g1"], p["be1"], p["g2"], p["be2"], p["g3"], p["be3"], b5_pad],
        axis=1).astype(jnp.float32)
    assert vec.shape == (1, _VEC_LEN)
    return {
        "w1": jnp.pad(p["w1"], ((0, k1_pad - in_dim), (0, 0))).astype(jnp.bfloat16),
        "w2": p["w2"].astype(jnp.bfloat16),
        "w3": p["w3"].astype(jnp.bfloat16),
        "w5": jnp.pad(p["w5"], ((0, 0), (0, n5_pad - classes))).astype(jnp.bfloat16),
        "vec": vec,
        "classes": classes,
    }


def _bn_ref(h, g, be):
    mean = jnp.mean(h, axis=0, keepdims=True)
    var = jnp.mean((h - mean) ** 2, axis=0, keepdims=True)
    return (h - mean) * jax.lax.rsqrt(var + EPS) * g + be


def mlp_reference_f32(x, p):
    """Pure-f32 JAX reference (module semantics, biases included)."""
    h = x
    for n in ["1", "2", "3"]:
        h = h @ p[f"w{n}"] + p[f"b{n}"]
        h = jax.nn.sigmoid(_bn_ref(h, p[f"g{n}"], p[f"be{n}"]))
    return h @ p["w5"] + p["b5"]


def mlp_reference_bf16(x, p):
    """Reference mirroring the kernel's matmul numerics (bf16 MXU inputs,
    f32 accumulation), still with biases and centered variance — confirms the
    kernel's bias-drop / var-form changes are numerically exact."""
    def dot(h, w):
        return jnp.dot(h.astype(jnp.bfloat16), w.astype(jnp.bfloat16),
                       preferred_element_type=jnp.float32)
    h = x
    for n in ["1", "2", "3"]:
        h = dot(h, p[f"w{n}"]) + p[f"b{n}"]
        h = jax.nn.sigmoid(_bn_ref(h, p[f"g{n}"], p[f"be{n}"]))
    return dot(h, p["w5"]) + p["b5"]


if __name__ == "__main__":
    key = jax.random.PRNGKey(0)
    key, kx, kp = jax.random.split(key, 3)

    # Batch of 128: sublane-aligned, fills the v5e MXU M dimension, and gives
    # BatchNorm a meaningful batch while staying tiny (<1 MiB of VMEM).
    B, IN_DIM, CLASSES = 128, 138, 2
    x = jax.random.normal(kx, (B, IN_DIM), jnp.float32)

    params = init_params(kp, in_dim=IN_DIM, classes=CLASSES)
    packed = pack_params(params, IN_DIM, CLASSES)

    out = jax.block_until_ready(mlp_forward(x, packed))
    assert out.shape == (B, CLASSES)

    # Tight check against a reference with the same (intended) bf16 matmul
    # numerics but with biases and centered variance — verifies the dropped
    # biases / E[h^2]-mean^2 variance / tanh-based sigmoid are exact-enough.
    ref_bf16 = jax.block_until_ready(mlp_reference_bf16(x, params))
    assert jnp.allclose(out, ref_bf16, atol=2e-3, rtol=2e-3), (
        float(jnp.max(jnp.abs(out - ref_bf16))))

    # Loose sanity check against the pure-f32 module semantics (bf16 matmuls
    # deliberately loosen numerics, hence the wider tolerance).
    ref_f32 = jax.block_until_ready(mlp_reference_f32(x, params))
    assert jnp.allclose(out, ref_f32, atol=1e-1, rtol=1e-1), (
        float(jnp.max(jnp.abs(out - ref_f32))))

    print("KERNEL_OK")
</pallas_src>

<mosaic_0001>
module attributes {stable_mosaic.version = 11 : i64} {
  func.func @_mlp_kernel(%arg0: memref<128x256xbf16, #tpu.memory_space<vmem>>, %arg1: memref<256x256xbf16, #tpu.memory_space<vmem>>, %arg2: memref<256x256xbf16, #tpu.memory_space<vmem>>, %arg3: memref<256x512xbf16, #tpu.memory_space<any>>, %arg4: memref<512x128xbf16, #tpu.memory_space<any>>, %arg5: memref<1x2176xf32, #tpu.memory_space<vmem>>, %arg6: memref<128x128xf32, #tpu.memory_space<vmem>>, %arg7: memref<256x512xbf16, #tpu.memory_space<vmem>>, %arg8: memref<512x128xbf16, #tpu.memory_space<vmem>>, %arg9: memref<2x!tpu.dma_semaphore, #tpu.memory_space<semaphore_mem>>) attributes {dimension_semantics = [], scalar_prefetch = 0 : i64, scratch_operands = 3 : i64, tpu.core_type = #tpu.core_type<tc>} {
    %c0_i32 = arith.constant 0 : i32
    %0 = tpu.memref_slice %arg9[%c0_i32] : memref<2x!tpu.dma_semaphore, #tpu.memory_space<semaphore_mem>> -> memref<1x!tpu.dma_semaphore, #tpu.memory_space<semaphore_mem>>
    %1 = tpu.memref_squeeze %0 : memref<1x!tpu.dma_semaphore, #tpu.memory_space<semaphore_mem>> -> memref<!tpu.dma_semaphore, #tpu.memory_space<semaphore_mem>>
    tpu.enqueue_dma source(%arg3 : memref<256x512xbf16, #tpu.memory_space<any>>) target(%arg7 : memref<256x512xbf16, #tpu.memory_space<vmem>>) target_semaphore(%1 : memref<!tpu.dma_semaphore, #tpu.memory_space<semaphore_mem>>)
    %c1_i32 = arith.constant 1 : i32
    %2 = tpu.memref_slice %arg9[%c1_i32] : memref<2x!tpu.dma_semaphore, #tpu.memory_space<semaphore_mem>> -> memref<1x!tpu.dma_semaphore, #tpu.memory_space<semaphore_mem>>
    %3 = tpu.memref_squeeze %2 : memref<1x!tpu.dma_semaphore, #tpu.memory_space<semaphore_mem>> -> memref<!tpu.dma_semaphore, #tpu.memory_space<semaphore_mem>>
    tpu.enqueue_dma source(%arg4 : memref<512x128xbf16, #tpu.memory_space<any>>) target(%arg8 : memref<512x128xbf16, #tpu.memory_space<vmem>>) target_semaphore(%3 : memref<!tpu.dma_semaphore, #tpu.memory_space<semaphore_mem>>)
    %c0 = arith.constant 0 : index
    %c0_0 = arith.constant 0 : index
    %4 = vector.load %arg5[%c0, %c0_0] : memref<1x2176xf32, #tpu.memory_space<vmem>>, vector<1x256xf32>
    %c0_1 = arith.constant 0 : index
    %c256 = arith.constant 256 : index
    %5 = vector.load %arg5[%c0_1, %c256] : memref<1x2176xf32, #tpu.memory_space<vmem>>, vector<1x256xf32>
    %c0_2 = arith.constant 0 : index
    %c512 = arith.constant 512 : index
    %6 = vector.load %arg5[%c0_2, %c512] : memref<1x2176xf32, #tpu.memory_space<vmem>>, vector<1x256xf32>
    %c0_3 = arith.constant 0 : index
    %c768 = arith.constant 768 : index
    %7 = vector.load %arg5[%c0_3, %c768] : memref<1x2176xf32, #tpu.memory_space<vmem>>, vector<1x256xf32>
    %c0_4 = arith.constant 0 : index
    %c1024 = arith.constant 1024 : index
    %8 = vector.load %arg5[%c0_4, %c1024] : memref<1x2176xf32, #tpu.memory_space<vmem>>, vector<1x512xf32>
    %c0_5 = arith.constant 0 : index
    %c1536 = arith.constant 1536 : index
    %9 = vector.load %arg5[%c0_5, %c1536] : memref<1x2176xf32, #tpu.memory_space<vmem>>, vector<1x512xf32>
    %c0_6 = arith.constant 0 : index
    %c2048 = arith.constant 2048 : index
    %10 = vector.load %arg5[%c0_6, %c2048] : memref<1x2176xf32, #tpu.memory_space<vmem>>, vector<1x128xf32>
    %c0_7 = arith.constant 0 : index
    %c0_8 = arith.constant 0 : index
    %11 = vector.load %arg0[%c0_7, %c0_8] : memref<128x256xbf16, #tpu.memory_space<vmem>>, vector<128x256xbf16>
    %c0_9 = arith.constant 0 : index
    %c0_10 = arith.constant 0 : index
    %12 = vector.load %arg1[%c0_9, %c0_10] : memref<256x256xbf16, #tpu.memory_space<vmem>>, vector<256x256xbf16>
    %cst = arith.constant dense<0.000000e+00> : vector<128x256xf32>
    %13 = tpu.matmul %11, %12, %cst {dimension_numbers = #tpu.dot_dimension_numbers<[1], [0], [0], [1], [0, 0, 1, 1], [], []>} : vector<128x256xbf16>, vector<256x256xbf16>, vector<128x256xf32> -> vector<128x256xf32>
    %cst_11 = arith.constant dense<0.000000e+00> : vector<256xf32>
    %14 = vector.multi_reduction <add>, %13, %cst_11 [0] : vector<128x256xf32> to vector<256xf32>
    %15 = vector.shape_cast %14 : vector<256xf32> to vector<1x256xf32>
    %cst_12 = arith.constant 1.280000e+02 : f32
    %16 = vector.broadcast %cst_12 : f32 to vector<1x256xf32>
    %17 = arith.divf %15, %16 : vector<1x256xf32>
    %18 = arith.mulf %13, %13 : vector<128x256xf32>
    %cst_13 = arith.constant dense<0.000000e+00> : vector<256xf32>
    %19 = vector.multi_reduction <add>, %18, %cst_13 [0] : vector<128x256xf32> to vector<256xf32>
    %20 = vector.shape_cast %19 : vector<256xf32> to vector<1x256xf32>
    %cst_14 = arith.constant 1.280000e+02 : f32
    %21 = vector.broadcast %cst_14 : f32 to vector<1x256xf32>
    %22 = arith.divf %20, %21 : vector<1x256xf32>
    %23 = arith.mulf %17, %17 : vector<1x256xf32>
    %24 = arith.subf %22, %23 : vector<1x256xf32>
    %cst_15 = arith.constant 9.99999974E-6 : f32
    %25 = vector.broadcast %cst_15 : f32 to vector<1x256xf32>
    %26 = arith.addf %24, %25 : vector<1x256xf32>
    %27 = math.rsqrt %26 : vector<1x256xf32>
    %28 = arith.mulf %27, %4 : vector<1x256xf32>
    %29 = arith.mulf %17, %28 : vector<1x256xf32>
    %30 = arith.subf %5, %29 : vector<1x256xf32>
    %31 = vector.broadcast %28 : vector<1x256xf32> to vector<128x256xf32>
    %32 = arith.mulf %13, %31 : vector<128x256xf32>
    %33 = vector.broadcast %30 : vector<1x256xf32> to vector<128x256xf32>
    %34 = arith.addf %32, %33 : vector<128x256xf32>
    %cst_16 = arith.constant 5.000000e-01 : f32
    %35 = vector.broadcast %cst_16 : f32 to vector<128x256xf32>
    %36 = arith.mulf %35, %34 : vector<128x256xf32>
    %37 = math.tanh %36 : vector<128x256xf32>
    %cst_17 = arith.constant 5.000000e-01 : f32
    %38 = vector.broadcast %cst_17 : f32 to vector<128x256xf32>
    %39 = arith.mulf %38, %37 : vector<128x256xf32>
    %cst_18 = arith.constant 5.000000e-01 : f32
    %40 = vector.broadcast %cst_18 : f32 to vector<128x256xf32>
    %41 = arith.addf %39, %40 : vector<128x256xf32>
    %42 = arith.truncf %41 : vector<128x256xf32> to vector<128x256xbf16>
    %c0_19 = arith.constant 0 : index
    %c0_20 = arith.constant 0 : index
    %43 = vector.load %arg2[%c0_19, %c0_20] : memref<256x256xbf16, #tpu.memory_space<vmem>>, vector<256x256xbf16>
    %cst_21 = arith.constant dense<0.000000e+00> : vector<128x256xf32>
    %44 = tpu.matmul %42, %43, %cst_21 {dimension_numbers = #tpu.dot_dimension_numbers<[1], [0], [0], [1], [0, 0, 1, 1], [], []>} : vector<128x256xbf16>, vector<256x256xbf16>, vector<128x256xf32> -> vector<128x256xf32>
    %cst_22 = arith.constant dense<0.000000e+00> : vector<256xf32>
    %45 = vector.multi_reduction <add>, %44, %cst_22 [0] : vector<128x256xf32> to vector<256xf32>
    %46 = vector.shape_cast %45 : vector<256xf32> to vector<1x256xf32>
    %cst_23 = arith.constant 1.280000e+02 : f32
    %47 = vector.broadcast %cst_23 : f32 to vector<1x256xf32>
    %48 = arith.divf %46, %47 : vector<1x256xf32>
    %49 = arith.mulf %44, %44 : vector<128x256xf32>
    %cst_24 = arith.constant dense<0.000000e+00> : vector<256xf32>
    %50 = vector.multi_reduction <add>, %49, %cst_24 [0] : vector<128x256xf32> to vector<256xf32>
    %51 = vector.shape_cast %50 : vector<256xf32> to vector<1x256xf32>
    %cst_25 = arith.constant 1.280000e+02 : f32
    %52 = vector.broadcast %cst_25 : f32 to vector<1x256xf32>
    %53 = arith.divf %51, %52 : vector<1x256xf32>
    %54 = arith.mulf %48, %48 : vector<1x256xf32>
    %55 = arith.subf %53, %54 : vector<1x256xf32>
    %cst_26 = arith.constant 9.99999974E-6 : f32
    %56 = vector.broadcast %cst_26 : f32 to vector<1x256xf32>
    %57 = arith.addf %55, %56 : vector<1x256xf32>
    %58 = math.rsqrt %57 : vector<1x256xf32>
    %59 = arith.mulf %58, %6 : vector<1x256xf32>
    %60 = arith.mulf %48, %59 : vector<1x256xf32>
    %61 = arith.subf %7, %60 : vector<1x256xf32>
    %62 = vector.broadcast %59 : vector<1x256xf32> to vector<128x256xf32>
    %63 = arith.mulf %44, %62 : vector<128x256xf32>
    %64 = vector.broadcast %61 : vector<1x256xf32> to vector<128x256xf32>
    %65 = arith.addf %63, %64 : vector<128x256xf32>
    %cst_27 = arith.constant 5.000000e-01 : f32
    %66 = vector.broadcast %cst_27 : f32 to vector<128x256xf32>
    %67 = arith.mulf %66, %65 : vector<128x256xf32>
    %68 = math.tanh %67 : vector<128x256xf32>
    %cst_28 = arith.constant 5.000000e-01 : f32
    %69 = vector.broadcast %cst_28 : f32 to vector<128x256xf32>
    %70 = arith.mulf %69, %68 : vector<128x256xf32>
    %cst_29 = arith.constant 5.000000e-01 : f32
    %71 = vector.broadcast %cst_29 : f32 to vector<128x256xf32>
    %72 = arith.addf %70, %71 : vector<128x256xf32>
    %73 = arith.truncf %72 : vector<128x256xf32> to vector<128x256xbf16>
    %c0_i32_30 = arith.constant 0 : i32
    %74 = tpu.memref_slice %arg9[%c0_i32_30] : memref<2x!tpu.dma_semaphore, #tpu.memory_space<semaphore_mem>> -> memref<1x!tpu.dma_semaphore, #tpu.memory_space<semaphore_mem>>
    %75 = tpu.memref_squeeze %74 : memref<1x!tpu.dma_semaphore, #tpu.memory_space<semaphore_mem>> -> memref<!tpu.dma_semaphore, #tpu.memory_space<semaphore_mem>>
    tpu.wait_dma2 semaphore(%75 : memref<!tpu.dma_semaphore, #tpu.memory_space<semaphore_mem>>) src(%arg3 : memref<256x512xbf16, #tpu.memory_space<any>>) dst(%arg7 : memref<256x512xbf16, #tpu.memory_space<vmem>>)
    %c0_31 = arith.constant 0 : index
    %c0_32 = arith.constant 0 : index
    %76 = vector.load %arg7[%c0_31, %c0_32] : memref<256x512xbf16, #tpu.memory_space<vmem>>, vector<256x512xbf16>
    %cst_33 = arith.constant dense<0.000000e+00> : vector<128x512xf32>
    %77 = tpu.matmul %73, %76, %cst_33 {dimension_numbers = #tpu.dot_dimension_numbers<[1], [0], [0], [1], [0, 0, 1, 1], [], []>} : vector<128x256xbf16>, vector<256x512xbf16>, vector<128x512xf32> -> vector<128x512xf32>
    %cst_34 = arith.constant dense<0.000000e+00> : vector<512xf32>
    %78 = vector.multi_reduction <add>, %77, %cst_34 [0] : vector<128x512xf32> to vector<512xf32>
    %79 = vector.shape_cast %78 : vector<512xf32> to vector<1x512xf32>
    %cst_35 = arith.constant 1.280000e+02 : f32
    %80 = vector.broadcast %cst_35 : f32 to vector<1x512xf32>
    %81 = arith.divf %79, %80 : vector<1x512xf32>
    %82 = arith.mulf %77, %77 : vector<128x512xf32>
    %cst_36 = arith.constant dense<0.000000e+00> : vector<512xf32>
    %83 = vector.multi_reduction <add>, %82, %cst_36 [0] : vector<128x512xf32> to vector<512xf32>
    %84 = vector.shape_cast %83 : vector<512xf32> to vector<1x512xf32>
    %cst_37 = arith.constant 1.280000e+02 : f32
    %85 = vector.broadcast %cst_37 : f32 to vector<1x512xf32>
    %86 = arith.divf %84, %85 : vector<1x512xf32>
    %87 = arith.mulf %81, %81 : vector<1x512xf32>
    %88 = arith.subf %86, %87 : vector<1x512xf32>
    %cst_38 = arith.constant 9.99999974E-6 : f32
    %89 = vector.broadcast %cst_38 : f32 to vector<1x512xf32>
    %90 = arith.addf %88, %89 : vector<1x512xf32>
    %91 = math.rsqrt %90 : vector<1x512xf32>
    %92 = arith.mulf %91, %8 : vector<1x512xf32>
    %93 = arith.mulf %81, %92 : vector<1x512xf32>
    %94 = arith.subf %9, %93 : vector<1x512xf32>
    %95 = vector.broadcast %92 : vector<1x512xf32> to vector<128x512xf32>
    %96 = arith.mulf %77, %95 : vector<128x512xf32>
    %97 = vector.broadcast %94 : vector<1x512xf32> to vector<128x512xf32>
    %98 = arith.addf %96, %97 : vector<128x512xf32>
    %cst_39 = arith.constant 5.000000e-01 : f32
    %99 = vector.broadcast %cst_39 : f32 to vector<128x512xf32>
    %100 = arith.mulf %99, %98 : vector<128x512xf32>
    %101 = math.tanh %100 : vector<128x512xf32>
    %cst_40 = arith.constant 5.000000e-01 : f32
    %102 = vector.broadcast %cst_40 : f32 to vector<128x512xf32>
    %103 = arith.mulf %102, %101 : vector<128x512xf32>
    %cst_41 = arith.constant 5.000000e-01 : f32
    %104 = vector.broadcast %cst_41 : f32 to vector<128x512xf32>
    %105 = arith.addf %103, %104 : vector<128x512xf32>
    %106 = arith.truncf %105 : vector<128x512xf32> to vector<128x512xbf16>
    %c1_i32_42 = arith.constant 1 : i32
    %107 = tpu.memref_slice %arg9[%c1_i32_42] : memref<2x!tpu.dma_semaphore, #tpu.memory_space<semaphore_mem>> -> memref<1x!tpu.dma_semaphore, #tpu.memory_space<semaphore_mem>>
    %108 = tpu.memref_squeeze %107 : memref<1x!tpu.dma_semaphore, #tpu.memory_space<semaphore_mem>> -> memref<!tpu.dma_semaphore, #tpu.memory_space<semaphore_mem>>
    tpu.wait_dma2 semaphore(%108 : memref<!tpu.dma_semaphore, #tpu.memory_space<semaphore_mem>>) src(%arg4 : memref<512x128xbf16, #tpu.memory_space<any>>) dst(%arg8 : memref<512x128xbf16, #tpu.memory_space<vmem>>)
    %c0_43 = arith.constant 0 : index
    %c0_44 = arith.constant 0 : index
    %109 = vector.load %arg8[%c0_43, %c0_44] : memref<512x128xbf16, #tpu.memory_space<vmem>>, vector<512x128xbf16>
    %cst_45 = arith.constant dense<0.000000e+00> : vector<128x128xf32>
    %110 = tpu.matmul %106, %109, %cst_45 {dimension_numbers = #tpu.dot_dimension_numbers<[1], [0], [0], [1], [0, 0, 1, 1], [], []>} : vector<128x512xbf16>, vector<512x128xbf16>, vector<128x128xf32> -> vector<128x128xf32>
    %111 = vector.broadcast %10 : vector<1x128xf32> to vector<128x128xf32>
    %112 = arith.addf %110, %111 : vector<128x128xf32>
    %c0_46 = arith.constant 0 : index
    %c0_47 = arith.constant 0 : index
    %113 = vector.load %arg6[%c0_46, %c0_47] : memref<128x128xf32, #tpu.memory_space<vmem>>, vector<128x128xf32>
    tpu.vector_store %arg6[%c0_46, %c0_47], %112 {strides = array<i32>} : memref<128x128xf32, #tpu.memory_space<vmem>>, vector<128x128xf32>,
    return
  }
}

</mosaic_0001>

<llo_original>
// kernel: tpu_custom_call.1
$region0: #{tpu_custom_call.1}
  #allocation0 [shape = 'u32[]', space=smem, size = 0x4, offset = 0x4, fixed_abs, tag = 'smem constant byte address 0x4 - core index']
  #allocation1 [shape = 'u32[144,128]{1,0:T(1,128)}', space=vmem, size = 0x12000, scoped, tag = 'internal scratch']
  #allocation2 [shape = 'bf16[256,512]{1,0:T(16,128)(2,1)}', space=vmem, size = 0x40000, scoped, tag = 'scratch operand']
  #allocation3 [shape = 'bf16[512,128]{1,0:T(16,128)(2,1)}', space=vmem, size = 0x20000, scoped, tag = 'scratch operand']
  #allocation4 [shape = 's32[2]{0}', space=sflag, size = 0x8, scoped, tag = 'scratch operand']
  #allocation12 [shape = 's32[]', space=sflag, size = 0x4, offset = 0, fixed_abs, tag = 'sflag constant byte address 0x0 - dummy sync flag']
  #allocation14 [shape = 's32[]', space=sflag, size = 0x4, offset = 0, fixed_abs, tag = 'sflag constant byte address 0x0 - dummy sync flag']
  #allocation15 [shape = 's32[]', space=sflag, size = 0x4, offset = 0, fixed_abs, tag = 'sflag constant byte address 0x0 - dummy sync flag']
  #allocation16 [shape = 'u32[]', space=smem, size = 0x4, offset = 0x44, fixed_abs, tag = 'smem constant byte address 0x44 - assertion arg 0']
  #allocation17 [shape = 'u32[]', space=smem, size = 0x4, offset = 0x48, fixed_abs, tag = 'smem constant byte address 0x48 - assertion arg 1']
  %s0 = inlined_call_operand.hbm [shape: bf16[128,256], index: 0, kind: input, shape index: {}]
  %s1 = inlined_call_operand.hbm [shape: bf16[256,256], index: 1, kind: input, shape index: {}]
  %s2 = inlined_call_operand.hbm [shape: bf16[256,256], index: 2, kind: input, shape index: {}]
  %s3 = inlined_call_operand.hbm [shape: bf16[256,512], index: 3, kind: input, shape index: {}]
  %s4 = inlined_call_operand.hbm [shape: bf16[512,128], index: 4, kind: input, shape index: {}]
  %s5 = inlined_call_operand.vmem [shape: f32[1,2176], index: 5, kind: input, shape index: {}]
  %s6 = inlined_call_operand.hbm [shape: f32[128,128], index: 6, kind: output, shape index: {}]
  %s7 = sld [smem:[#allocation0]]
  $region42: #{tpu_custom_call.1} parent=0
    _
  %s9 = ssub.s32 1, %s7
  %s10 = scalar_select 0, %s9, %s7
  $region1: #{tpu_custom_call.1} parent=0
    #allocation5 [shape = 'u8[65536]{0}', space=vmem, size = 0x10000, scoped, tag = 'input window, operand 0, single buffered']
    #allocation6 [shape = 's32[1]{0}', space=sflag, size = 0x4, scoped, tag = 'scoped memory for tpu_custom_call.1']
    #allocation7 [shape = 's32[1]{0}', space=sflag, size = 0x4, scoped, tag = 'scoped memory for tpu_custom_call.1']
    #allocation8 [shape = 'u8[131072]{0}', space=vmem, size = 0x20000, scoped, tag = 'input window, operand 1, single buffered']
    #allocation9 [shape = 's32[1]{0}', space=sflag, size = 0x4, scoped, tag = 'scoped memory for tpu_custom_call.1']
    #allocation10 [shape = 'u8[131072]{0}', space=vmem, size = 0x20000, scoped, tag = 'input window, operand 2, single buffered']
    #allocation11 [shape = 'u8[65536]{0}', space=vmem, size = 0x10000, scoped, tag = 'output window, operand 0, single buffered']
    #allocation13 [shape = 'u32[9]{0}', space=smem, size = 0x24, scoped, tag = 'DMA stride descriptor']
    %11 = vsyncpa [#allocation6], 0
    %12 = vsyncpa [#allocation9], 0
    %13 = vsyncpa [#allocation7], 0
    // Predicated region
    $region2: #{tpu_custom_call.1} parent=1 // pred_check
      _
    $region3: #{tpu_custom_call.1} parent=1 // pred_check_branch
      %15 = sbr.rel (0) target = $region5
    $region4: #{tpu_custom_call.1} parent=1 // pred_region
      %s17 = ssub.s32 2048, 2048
      %18 = vsyncadd [#allocation6], %s17
      %s19 = sshll.u32 [#allocation5], 4
      %s20 = int_to_ptr.vmem [resolvable:$true] %s19
      %25 = dma.hbm_to_vmem [thread:$0]  %s0, 2048, %s20, [#allocation6], 128, 128, 8
    $region5: #{tpu_custom_call.1} parent=1 // pred_fallthru
      _
    // Predicated region
    $region6: #{tpu_custom_call.1} parent=1 // pred_check
      _
    $region7: #{tpu_custom_call.1} parent=1 // pred_check_branch
      %27 = sbr.rel (0) target = $region9
    $region8: #{tpu_custom_call.1} parent=1 // pred_region
      %s29 = ssub.s32 4096, 4096
      %30 = vsyncadd [#allocation9], %s29
      %s31 = sshll.u32 [#allocation8], 4
      %s32 = int_to_ptr.vmem [resolvable:$true] %s31
      %37 = dma.hbm_to_vmem [thread:$0]  %s1, 4096, %s32, [#allocation9], 128, 128, 8
    $region9: #{tpu_custom_call.1} parent=1 // pred_fallthru
      _
    // Predicated region
    $region10: #{tpu_custom_call.1} parent=1 // pred_check
      _
    $region11: #{tpu_custom_call.1} parent=1 // pred_check_branch
      %39 = sbr.rel (0) target = $region13
    $region12: #{tpu_custom_call.1} parent=1 // pred_region
      %s41 = ssub.s32 4096, 4096
      %42 = vsyncadd [#allocation9], %s41
      %s43 = sshll.u32 [#allocation10], 4
      %s44 = int_to_ptr.vmem [resolvable:$true] %s43
      %49 = dma.hbm_to_vmem [thread:$0]  %s2, 4096, %s44, [#allocation9], 128, 128, 8
    $region13: #{tpu_custom_call.1} parent=1 // pred_fallthru
      _
    // Predicated region
    $region14: #{tpu_custom_call.1} parent=1 // pred_check
      _
    $region15: #{tpu_custom_call.1} parent=1 // pred_check_branch
      %51 = sbr.rel (0) target = $region17
    $region16: #{tpu_custom_call.1} parent=1 // pred_region
      _
    $region17: #{tpu_custom_call.1} parent=1 // pred_fallthru
      _
    // Predicated region
    $region18: #{tpu_custom_call.1} parent=1 // pred_check
      _
    $region19: #{tpu_custom_call.1} parent=1 // pred_check_branch
      %53 = sbr.rel (0) target = $region21
    $region20: #{tpu_custom_call.1} parent=1 // pred_region
      %54 = dma.done [#allocation6], 2048
    $region21: #{tpu_custom_call.1} parent=1 // pred_fallthru
      _
    // Predicated region
    $region22: #{tpu_custom_call.1} parent=1 // pred_check
      _
    $region23: #{tpu_custom_call.1} parent=1 // pred_check_branch
      %56 = sbr.rel (0) target = $region25
    $region24: #{tpu_custom_call.1} parent=1 // pred_region
      %57 = dma.done [#allocation9], 4096
    $region25: #{tpu_custom_call.1} parent=1 // pred_fallthru
      _
    // Predicated region
    $region26: #{tpu_custom_call.1} parent=1 // pred_check
      _
    $region27: #{tpu_custom_call.1} parent=1 // pred_check_branch
      %59 = sbr.rel (0) target = $region29
    $region28: #{tpu_custom_call.1} parent=1 // pred_region
      %60 = dma.done [#allocation9], 4096
    $region29: #{tpu_custom_call.1} parent=1 // pred_fallthru
      _
    %s63 = sshll.u32 1, 14
    %s64 = sxor.u32 4294967295, %s63
    %s66 = sld [smem:[#allocation0]]
    %s67 = sadd.s32 2, %s66
    %s69 = sshll.u32 7, 26
    %s70 = sxor.u32 4294967295, %s69
    %s71 = sand.u32 0, %s70
    %s72 = sshll.u32 %s67, 26
    %s73 = sor.u32 %s71, %s72
    %s74 = sshll.u32 [#allocation2], 4
    %s75 = int_to_ptr.vmem [resolvable:$true] %s74
    %78 = sst [smem:[#allocation13]] 512
    %s79 = scalar_lea.smem [#allocation13], 1
    %80 = sst [smem:[%s79]] 512
    %s81 = scalar_lea.smem [#allocation13], 2
    %82 = sst [smem:[%s81]] 4
    %s83 = scalar_lea.smem [#allocation13], 3
    %84 = sst [smem:[%s83]] 64
    %s85 = scalar_lea.smem [#allocation13], 4
    %86 = sst [smem:[%s85]] 128
    %s87 = scalar_lea.smem [#allocation13], 5
    %88 = sst [smem:[%s87]] 2
    %s89 = scalar_lea.smem [#allocation13], 6
    %90 = sst [smem:[%s89]] 256
    %s91 = scalar_lea.smem [#allocation13], 7
    %92 = sst [smem:[%s91]] 64
    %s93 = scalar_lea.smem [#allocation13], 8
    %94 = sst [smem:[%s93]] 4
    %96 = dma.general %s3, 8192, %s75, [#allocation4], [#allocation12], [#allocation13], %s73, 0
    %s97 = scalar_lea.sflag [#allocation4], 1
    // Predicated region
    $region30: #{tpu_custom_call.1} parent=1 // pred_check
      _
    $region31: #{tpu_custom_call.1} parent=1 // pred_check_branch
      %99 = sbr.rel target = $region33
    $region32: #{tpu_custom_call.1} parent=1 // pred_region
      %100 = sst [smem:[#allocation16]] [#allocation15]
      %101 = sst [smem:[#allocation17]] [#allocation14]
    $region33: #{tpu_custom_call.1} parent=1 // pred_fallthru
      _
    %103 = shalt.err (0)
    %s105 = sshll.u32 [#allocation3], 4
    %s106 = int_to_ptr.vmem [resolvable:$true] %s105
    %108 = dma.hbm_to_vmem [thread:$0]  %s4, 4096, %s106, %s97
    %v109 = vld [vmem:[%s5] sm:$0x3]
    %v110 = vld [vmem:[%s5 + $0x2] sm:$0x3]
    %v111 = vld [vmem:[%s5 + $0x4] sm:$0x3]
    %v112 = vld [vmem:[%s5 + $0x6] sm:$0x3]
    %v113 = vld [vmem:[%s5 + $0x8] sm:$0xf]
    %v114 = vld [vmem:[%s5 + $0xc] sm:$0xf]
    %v115 = vld [vmem:[%s5 + $0x10] sm:$0x1]
    %v116 = vld [vmem:[#allocation5] sm:$0xff]
    %v117 = vld [vmem:[#allocation5 + $0x8] sm:$0xff]
    %v118 = vld [vmem:[#allocation5 + $0x10] sm:$0xff]
    %v119 = vld [vmem:[#allocation5 + $0x18] sm:$0xff]
    %v120 = vld [vmem:[#allocation5 + $0x20] sm:$0xff]
    %v121 = vld [vmem:[#allocation5 + $0x28] sm:$0xff]
    %v122 = vld [vmem:[#allocation5 + $0x30] sm:$0xff]
    %v123 = vld [vmem:[#allocation5 + $0x38] sm:$0xff]
    %v124 = vld [vmem:[#allocation5 + $0x40] sm:$0xff]
    %v125 = vld [vmem:[#allocation5 + $0x48] sm:$0xff]
    %v126 = vld [vmem:[#allocation5 + $0x50] sm:$0xff]
    %v127 = vld [vmem:[#allocation5 + $0x58] sm:$0xff]
    %v128 = vld [vmem:[#allocation5 + $0x60] sm:$0xff]
    %v129 = vld [vmem:[#allocation5 + $0x68] sm:$0xff]
    %v130 = vld [vmem:[#allocation5 + $0x70] sm:$0xff]
    %v131 = vld [vmem:[#allocation5 + $0x78] sm:$0xff]
    %v132 = vld [vmem:[#allocation8] sm:$0xff]
    %v133 = vld [vmem:[#allocation8 + $0x8] sm:$0xff]
    %v134 = vld [vmem:[#allocation8 + $0x10] sm:$0xff]
    %v135 = vld [vmem:[#allocation8 + $0x18] sm:$0xff]
    %v136 = vld [vmem:[#allocation8 + $0x20] sm:$0xff]
    %v137 = vld [vmem:[#allocation8 + $0x28] sm:$0xff]
    %v138 = vld [vmem:[#allocation8 + $0x30] sm:$0xff]
    %v139 = vld [vmem:[#allocation8 + $0x38] sm:$0xff]
    %v140 = vld [vmem:[#allocation8 + $0x40] sm:$0xff]
    %v141 = vld [vmem:[#allocation8 + $0x48] sm:$0xff]
    %v142 = vld [vmem:[#allocation8 + $0x50] sm:$0xff]
    %v143 = vld [vmem:[#allocation8 + $0x58] sm:$0xff]
    %v144 = vld [vmem:[#allocation8 + $0x60] sm:$0xff]
    %v145 = vld [vmem:[#allocation8 + $0x68] sm:$0xff]
    %v146 = vld [vmem:[#allocation8 + $0x70] sm:$0xff]
    %v147 = vld [vmem:[#allocation8 + $0x78] sm:$0xff]
    %v148 = vld [vmem:[#allocation8 + $0x80] sm:$0xff]
    %v149 = vld [vmem:[#allocation8 + $0x88] sm:$0xff]
    %v150 = vld [vmem:[#allocation8 + $0x90] sm:$0xff]
    %v151 = vld [vmem:[#allocation8 + $0x98] sm:$0xff]
    %v152 = vld [vmem:[#allocation8 + $0xa0] sm:$0xff]
    %v153 = vld [vmem:[#allocation8 + $0xa8] sm:$0xff]
    %v154 = vld [vmem:[#allocation8 + $0xb0] sm:$0xff]
    %v155 = vld [vmem:[#allocation8 + $0xb8] sm:$0xff]
    %v156 = vld [vmem:[#allocation8 + $0xc0] sm:$0xff]
    %v157 = vld [vmem:[#allocation8 + $0xc8] sm:$0xff]
    %v158 = vld [vmem:[#allocation8 + $0xd0] sm:$0xff]
    %v159 = vld [vmem:[#allocation8 + $0xd8] sm:$0xff]
    %v160 = vld [vmem:[#allocation8 + $0xe0] sm:$0xff]
    %v161 = vld [vmem:[#allocation8 + $0xe8] sm:$0xff]
    %v162 = vld [vmem:[#allocation8 + $0xf0] sm:$0xff]
    %v163 = vld [vmem:[#allocation8 + $0xf8] sm:$0xff]
    %v180 = vunpack.c.l.b16 %v116
    %v181 = vunpack.c.h.b16 %v116
    %v182 = vunpack.c.l.b16 %v117
    %v183 = vunpack.c.h.b16 %v117
    %v184 = vunpack.c.l.b16 %v118
    %v185 = vunpack.c.h.b16 %v118
    %v186 = vunpack.c.l.b16 %v119
    %v187 = vunpack.c.h.b16 %v119
    %v188 = vunpack.c.l.b16 %v120
    %v189 = vunpack.c.h.b16 %v120
    %v190 = vunpack.c.l.b16 %v121
    %v191 = vunpack.c.h.b16 %v121
    %v192 = vunpack.c.l.b16 %v122
    %v193 = vunpack.c.h.b16 %v122
    %v194 = vunpack.c.l.b16 %v123
    %v195 = vunpack.c.h.b16 %v123
    %v196 = vunpack.c.l.b16 %v124
    %v197 = vunpack.c.h.b16 %v124
    %v198 = vunpack.c.l.b16 %v125
    %v199 = vunpack.c.h.b16 %v125
    %v200 = vunpack.c.l.b16 %v126
    %v201 = vunpack.c.h.b16 %v126
    %v202 = vunpack.c.l.b16 %v127
    %v203 = vunpack.c.h.b16 %v127
    %v204 = vunpack.c.l.b16 %v128
    %v205 = vunpack.c.h.b16 %v128
    %v206 = vunpack.c.l.b16 %v129
    %v207 = vunpack.c.h.b16 %v129
    %v208 = vunpack.c.l.b16 %v130
    %v209 = vunpack.c.h.b16 %v130
    %v210 = vunpack.c.l.b16 %v131
    %v211 = vunpack.c.h.b16 %v131
    %v212 = vpack.c.b16 %v182, %v180
    %v213 = vpack.c.b16 %v183, %v181
    %v214 = vpack.c.b16 %v186, %v184
    %v215 = vpack.c.b16 %v187, %v185
    %v216 = vpack.c.b16 %v190, %v188
    %v217 = vpack.c.b16 %v191, %v189
    %v218 = vpack.c.b16 %v194, %v192
    %v219 = vpack.c.b16 %v195, %v193
    %v220 = vpack.c.b16 %v198, %v196
    %v221 = vpack.c.b16 %v199, %v197
    %v222 = vpack.c.b16 %v202, %v200
    %v223 = vpack.c.b16 %v203, %v201
    %v224 = vpack.c.b16 %v206, %v204
    %v225 = vpack.c.b16 %v207, %v205
    %v226 = vpack.c.b16 %v210, %v208
    %v227 = vpack.c.b16 %v211, %v209
    %v276 = vunpack.c.l.b16 %v132
    %v277 = vunpack.c.h.b16 %v132
    %v278 = vunpack.c.l.b16 %v133
    %v279 = vunpack.c.h.b16 %v133
    %v280 = vunpack.c.l.b16 %v134
    %v281 = vunpack.c.h.b16 %v134
    %v282 = vunpack.c.l.b16 %v135
    %v283 = vunpack.c.h.b16 %v135
    %v284 = vunpack.c.l.b16 %v136
    %v285 = vunpack.c.h.b16 %v136
    %v286 = vunpack.c.l.b16 %v137
    %v287 = vunpack.c.h.b16 %v137
    %v288 = vunpack.c.l.b16 %v138
    %v289 = vunpack.c.h.b16 %v138
    %v290 = vunpack.c.l.b16 %v139
    %v291 = vunpack.c.h.b16 %v139
    %v292 = vunpack.c.l.b16 %v140
    %v293 = vunpack.c.h.b16 %v140
    %v294 = vunpack.c.l.b16 %v141
    %v295 = vunpack.c.h.b16 %v141
    %v296 = vunpack.c.l.b16 %v142
    %v297 = vunpack.c.h.b16 %v142
    %v298 = vunpack.c.l.b16 %v143
    %v299 = vunpack.c.h.b16 %v143
    %v300 = vunpack.c.l.b16 %v144
    %v301 = vunpack.c.h.b16 %v144
    %v302 = vunpack.c.l.b16 %v145
    %v303 = vunpack.c.h.b16 %v145
    %v304 = vunpack.c.l.b16 %v146
    %v305 = vunpack.c.h.b16 %v146
    %v306 = vunpack.c.l.b16 %v147
    %v307 = vunpack.c.h.b16 %v147
    %v308 = vunpack.c.l.b16 %v148
    %v309 = vunpack.c.h.b16 %v148
    %v310 = vunpack.c.l.b16 %v149
    %v311 = vunpack.c.h.b16 %v149
    %v312 = vunpack.c.l.b16 %v150
    %v313 = vunpack.c.h.b16 %v150
    %v314 = vunpack.c.l.b16 %v151
    %v315 = vunpack.c.h.b16 %v151
    %v316 = vunpack.c.l.b16 %v152
    %v317 = vunpack.c.h.b16 %v152
    %v318 = vunpack.c.l.b16 %v153
    %v319 = vunpack.c.h.b16 %v153
    %v320 = vunpack.c.l.b16 %v154
    %v321 = vunpack.c.h.b16 %v154
    %v322 = vunpack.c.l.b16 %v155
    %v323 = vunpack.c.h.b16 %v155
    %v324 = vunpack.c.l.b16 %v156
    %v325 = vunpack.c.h.b16 %v156
    %v326 = vunpack.c.l.b16 %v157
    %v327 = vunpack.c.h.b16 %v157
    %v328 = vunpack.c.l.b16 %v158
    %v329 = vunpack.c.h.b16 %v158
    %v330 = vunpack.c.l.b16 %v159
    %v331 = vunpack.c.h.b16 %v159
    %v332 = vunpack.c.l.b16 %v160
    %v333 = vunpack.c.h.b16 %v160
    %v334 = vunpack.c.l.b16 %v161
    %v335 = vunpack.c.h.b16 %v161
    %v336 = vunpack.c.l.b16 %v162
    %v337 = vunpack.c.h.b16 %v162
    %v338 = vunpack.c.l.b16 %v163
    %v339 = vunpack.c.h.b16 %v163
    %v340 = vpack.c.b16 %v278, %v276
    %v341 = vpack.c.b16 %v279, %v277
    %v342 = vpack.c.b16 %v282, %v280
    %v343 = vpack.c.b16 %v283, %v281
    %v344 = vpack.c.b16 %v286, %v284
    %v345 = vpack.c.b16 %v287, %v285
    %v346 = vpack.c.b16 %v290, %v288
    %v347 = vpack.c.b16 %v291, %v289
    %v348 = vpack.c.b16 %v294, %v292
    %v349 = vpack.c.b16 %v295, %v293
    %v350 = vpack.c.b16 %v298, %v296
    %v351 = vpack.c.b16 %v299, %v297
    %v352 = vpack.c.b16 %v302, %v300
    %v353 = vpack.c.b16 %v303, %v301
    %v354 = vpack.c.b16 %v306, %v304
    %v355 = vpack.c.b16 %v307, %v305
    %v356 = vpack.c.b16 %v310, %v308
    %v357 = vpack.c.b16 %v311, %v309
    %v358 = vpack.c.b16 %v314, %v312
    %v359 = vpack.c.b16 %v315, %v313
    %v360 = vpack.c.b16 %v318, %v316
    %v361 = vpack.c.b16 %v319, %v317
    %v362 = vpack.c.b16 %v322, %v320
    %v363 = vpack.c.b16 %v323, %v321
    %v364 = vpack.c.b16 %v326, %v324
    %v365 = vpack.c.b16 %v327, %v325
    %v366 = vpack.c.b16 %v330, %v328
    %v367 = vpack.c.b16 %v331, %v329
    %v368 = vpack.c.b16 %v334, %v332
    %v369 = vpack.c.b16 %v335, %v333
    %v370 = vpack.c.b16 %v338, %v336
    %v371 = vpack.c.b16 %v339, %v337
    %404 = vmatprep.subr.bf16.mxu0 %v341
    %405 = vmatpush1.bf16.msra.mxu0 %v340
    %406 = vmatprep.subr.bf16.mxu0 %v343
    %407 = vmatpush1.bf16.msra.mxu0 %v342
    %408 = vmatprep.subr.bf16.mxu0 %v345
    %409 = vmatpush1.bf16.msra.mxu0 %v344
    %410 = vmatprep.subr.bf16.mxu0 %v347
    %411 = vmatpush1.bf16.msra.mxu0 %v346
    %412 = vmatprep.subr.bf16.mxu0 %v349
    %413 = vmatpush1.bf16.msra.mxu0 %v348
    %414 = vmatprep.subr.bf16.mxu0 %v351
    %415 = vmatpush1.bf16.msra.mxu0 %v350
    %416 = vmatprep.subr.bf16.mxu0 %v353
    %417 = vmatpush1.bf16.msra.mxu0 %v352
    %418 = vmatprep.subr.bf16.mxu0 %v355
    %419 = vmatpush1.bf16.msra.mxu0 %v354
    %420 = vmatprep.subr.bf16.mxu0 %v357
    %421 = vmatpush1.bf16.msra.mxu0 %v356
    %422 = vmatprep.subr.bf16.mxu0 %v359
    %423 = vmatpush1.bf16.msra.mxu0 %v358
    %424 = vmatprep.subr.bf16.mxu0 %v361
    %425 = vmatpush1.bf16.msra.mxu0 %v360
    %426 = vmatprep.subr.bf16.mxu0 %v363
    %427 = vmatpush1.bf16.msra.mxu0 %v362
    %428 = vmatprep.subr.bf16.mxu0 %v365
    %429 = vmatpush1.bf16.msra.mxu0 %v364
    %430 = vmatprep.subr.bf16.mxu0 %v367
    %431 = vmatpush1.bf16.msra.mxu0 %v366
    %432 = vmatprep.subr.bf16.mxu0 %v369
    %433 = vmatpush1.bf16.msra.mxu0 %v368
    %434 = vmatprep.subr.bf16.mxu0 %v371
    %435 = vmatpush1.bf16.msra.mxu0 %v370
    %436 = vmatprep.mubr.bf16.mxu0 %v213
    %437 = vmatmul.mubr.bf16.gmra.mrb[0].mxu0 %v212
    %v438 = vpop.f32.mrb[0].mxu0
    %v439 = vadd.f32 0.0, %v438
    %v440 = vpop.f32.mrb[0].mxu0
    %v441 = vadd.f32 0.0, %v440
    %v442 = vpop.f32.mrb[0].mxu0
    %v443 = vadd.f32 0.0, %v442
    %v444 = vpop.f32.mrb[0].mxu0
    %v445 = vadd.f32 0.0, %v444
    %446 = vmatprep.mubr.bf16.mxu0 %v215
    %447 = vmatmul.mubr.bf16.gmra.mrb[0].mxu0 %v214
    %v448 = vpop.f32.mrb[0].mxu0
    %v449 = vadd.f32 0.0, %v448
    %v450 = vpop.f32.mrb[0].mxu0
    %v451 = vadd.f32 0.0, %v450
    %v452 = vpop.f32.mrb[0].mxu0
    %v453 = vadd.f32 0.0, %v452
    %v454 = vpop.f32.mrb[0].mxu0
    %v455 = vadd.f32 0.0, %v454
    %456 = vmatprep.mubr.bf16.mxu0 %v217
    %457 = vmatmul.mubr.bf16.gmra.mrb[0].mxu0 %v216
    %v458 = vpop.f32.mrb[0].mxu0
    %v459 = vadd.f32 0.0, %v458
    %v460 = vpop.f32.mrb[0].mxu0
    %v461 = vadd.f32 0.0, %v460
    %v462 = vpop.f32.mrb[0].mxu0
    %v463 = vadd.f32 0.0, %v462
    %v464 = vpop.f32.mrb[0].mxu0
    %v465 = vadd.f32 0.0, %v464
    %466 = vmatprep.mubr.bf16.mxu0 %v219
    %467 = vmatmul.mubr.bf16.gmra.mrb[0].mxu0 %v218
    %v468 = vpop.f32.mrb[0].mxu0
    %v469 = vadd.f32 0.0, %v468
    %v470 = vpop.f32.mrb[0].mxu0
    %v471 = vadd.f32 0.0, %v470
    %v472 = vpop.f32.mrb[0].mxu0
    %v473 = vadd.f32 0.0, %v472
    %v474 = vpop.f32.mrb[0].mxu0
    %v475 = vadd.f32 0.0, %v474
    %476 = vmatprep.mubr.bf16.mxu0 %v221
    %477 = vmatmul.mubr.bf16.gmra.mrb[0].mxu0 %v220
    %v478 = vpop.f32.mrb[0].mxu0
    %v479 = vadd.f32 0.0, %v478
    %v480 = vpop.f32.mrb[0].mxu0
    %v481 = vadd.f32 0.0, %v480
    %v482 = vpop.f32.mrb[0].mxu0
    %v483 = vadd.f32 0.0, %v482
    %v484 = vpop.f32.mrb[0].mxu0
    %v485 = vadd.f32 0.0, %v484
    %486 = vmatprep.mubr.bf16.mxu0 %v223
    %487 = vmatmul.mubr.bf16.gmra.mrb[0].mxu0 %v222
    %v488 = vpop.f32.mrb[0].mxu0
    %v489 = vadd.f32 0.0, %v488
    %v490 = vpop.f32.mrb[0].mxu0
    %v491 = vadd.f32 0.0, %v490
    %v492 = vpop.f32.mrb[0].mxu0
    %v493 = vadd.f32 0.0, %v492
    %v494 = vpop.f32.mrb[0].mxu0
    %v495 = vadd.f32 0.0, %v494
    %496 = vmatprep.mubr.bf16.mxu0 %v225
    %497 = vmatmul.mubr.bf16.gmra.mrb[0].mxu0 %v224
    %v498 = vpop.f32.mrb[0].mxu0
    %v499 = vadd.f32 0.0, %v498
    %v500 = vpop.f32.mrb[0].mxu0
    %v501 = vadd.f32 0.0, %v500
    %v502 = vpop.f32.mrb[0].mxu0
    %v503 = vadd.f32 0.0, %v502
    %v504 = vpop.f32.mrb[0].mxu0
    %v505 = vadd.f32 0.0, %v504
    %506 = vmatprep.mubr.bf16.mxu0 %v227
    %507 = vmatmul.mubr.bf16.gmra.mrb[0].mxu0 %v226
    %v508 = vpop.f32.mrb[0].mxu0
    %v509 = vadd.f32 0.0, %v508
    %v510 = vpop.f32.mrb[0].mxu0
    %v511 = vadd.f32 0.0, %v510
    %v512 = vpop.f32.mrb[0].mxu0
    %v513 = vadd.f32 0.0, %v512
    %v514 = vpop.f32.mrb[0].mxu0
    %v515 = vadd.f32 0.0, %v514
    %516 = vdwg.mxu0
    %v517 = vadd.f32 %v439, %v443
    %v518 = vadd.f32 %v517, %v449
    %v519 = vadd.f32 %v518, %v453
    %v520 = vadd.f32 %v519, %v459
    %v521 = vadd.f32 %v520, %v463
    %v522 = vadd.f32 %v521, %v469
    %v523 = vadd.f32 %v522, %v473
    %v524 = vadd.f32 %v523, %v479
    %v525 = vadd.f32 %v524, %v483
    %v526 = vadd.f32 %v525, %v489
    %v527 = vadd.f32 %v526, %v493
    %v528 = vadd.f32 %v527, %v499
    %v529 = vadd.f32 %v528, %v503
    %v530 = vadd.f32 %v529, %v509
    %v531 = vadd.f32 %v530, %v513
    %v532 = vrot.slane %v531, 4
    %v533 = vadd.f32 %v531, %v532
    %v534 = vrot.slane %v533, 2
    %v535 = vadd.f32 %v533, %v534
    %v536 = vrot.slane %v535, 1
    %v537 = vadd.f32 %v535, %v536
    %v538 = vadd.f32 %v441, %v445
    %v539 = vadd.f32 %v538, %v451
    %v540 = vadd.f32 %v539, %v455
    %v541 = vadd.f32 %v540, %v461
    %v542 = vadd.f32 %v541, %v465
    %v543 = vadd.f32 %v542, %v471
    %v544 = vadd.f32 %v543, %v475
    %v545 = vadd.f32 %v544, %v481
    %v546 = vadd.f32 %v545, %v485
    %v547 = vadd.f32 %v546, %v491
    %v548 = vadd.f32 %v547, %v495
    %v549 = vadd.f32 %v548, %v501
    %v550 = vadd.f32 %v549, %v505
    %v551 = vadd.f32 %v550, %v511
    %v552 = vadd.f32 %v551, %v515
    %v553 = vrot.slane %v552, 4
    %v554 = vadd.f32 %v552, %v553
    %v555 = vrot.slane %v554, 2
    %v556 = vadd.f32 %v554, %v555
    %v557 = vrot.slane %v556, 1
    %v558 = vadd.f32 %v556, %v557
    %v559 = vrcp.pop 128.0
    %v560 = vmul.f32 %v537, %v559
    %v561 = vmul.f32 %v558, %v559
    %v562 = vmul.f32 %v439, %v439
    %v563 = vmul.f32 %v441, %v441
    %v564 = vmul.f32 %v443, %v443
    %v565 = vmul.f32 %v445, %v445
    %v566 = vmul.f32 %v449, %v449
    %v567 = vmul.f32 %v451, %v451
    %v568 = vmul.f32 %v453, %v453
    %v569 = vmul.f32 %v455, %v455
    %v570 = vmul.f32 %v459, %v459
    %v571 = vmul.f32 %v461, %v461
    %v572 = vmul.f32 %v463, %v463
    %v573 = vmul.f32 %v465, %v465
    %v574 = vmul.f32 %v469, %v469
    %v575 = vmul.f32 %v471, %v471
    %v576 = vmul.f32 %v473, %v473
    %v577 = vmul.f32 %v475, %v475
    %v578 = vmul.f32 %v479, %v479
    %v579 = vmul.f32 %v481, %v481
    %v580 = vmul.f32 %v483, %v483
    %v581 = vmul.f32 %v485, %v485
    %v582 = vmul.f32 %v489, %v489
    %v583 = vmul.f32 %v491, %v491
    %v584 = vmul.f32 %v493, %v493
    %v585 = vmul.f32 %v495, %v495
    %v586 = vmul.f32 %v499, %v499
    %v587 = vmul.f32 %v501, %v501
    %v588 = vmul.f32 %v503, %v503
    %v589 = vmul.f32 %v505, %v505
    %v590 = vmul.f32 %v509, %v509
    %v591 = vmul.f32 %v511, %v511
    %v592 = vmul.f32 %v513, %v513
    %v593 = vmul.f32 %v515, %v515
    %v594 = vadd.f32 %v562, %v564
    %v595 = vadd.f32 %v594, %v566
    %v596 = vadd.f32 %v595, %v568
    %v597 = vadd.f32 %v596, %v570
    %v598 = vadd.f32 %v597, %v572
    %v599 = vadd.f32 %v598, %v574
    %v600 = vadd.f32 %v599, %v576
    %v601 = vadd.f32 %v600, %v578
    %v602 = vadd.f32 %v601, %v580
    %v603 = vadd.f32 %v602, %v582
    %v604 = vadd.f32 %v603, %v584
    %v605 = vadd.f32 %v604, %v586
    %v606 = vadd.f32 %v605, %v588
    %v607 = vadd.f32 %v606, %v590
    %v608 = vadd.f32 %v607, %v592
    %v609 = vrot.slane %v608, 4
    %v610 = vadd.f32 %v608, %v609
    %v611 = vrot.slane %v610, 2
    %v612 = vadd.f32 %v610, %v611
    %v613 = vrot.slane %v612, 1
    %v614 = vadd.f32 %v612, %v613
    %v615 = vadd.f32 %v563, %v565
    %v616 = vadd.f32 %v615, %v567
    %v617 = vadd.f32 %v616, %v569
    %v618 = vadd.f32 %v617, %v571
    %v619 = vadd.f32 %v618, %v573
    %v620 = vadd.f32 %v619, %v575
    %v621 = vadd.f32 %v620, %v577
    %v622 = vadd.f32 %v621, %v579
    %v623 = vadd.f32 %v622, %v581
    %v624 = vadd.f32 %v623, %v583
    %v625 = vadd.f32 %v624, %v585
    %v626 = vadd.f32 %v625, %v587
    %v627 = vadd.f32 %v626, %v589
    %v628 = vadd.f32 %v627, %v591
    %v629 = vadd.f32 %v628, %v593
    %v630 = vrot.slane %v629, 4
    %v631 = vadd.f32 %v629, %v630
    %v632 = vrot.slane %v631, 2
    %v633 = vadd.f32 %v631, %v632
    %v634 = vrot.slane %v633, 1
    %v635 = vadd.f32 %v633, %v634
    %v636 = vmul.f32 %v614, %v559
    %v637 = vmul.f32 %v635, %v559
    %v638 = vmul.f32 %v560, %v560
    %v639 = vmul.f32 %v561, %v561
    %v640 = vsub.f32 %v636, %v638
    %v641 = vsub.f32 %v637, %v639
    %v642 = vadd.f32 %v640, 1e-05
    %v643 = vadd.f32 %v641, 1e-05
    %v644 = vrsqrt.pop %v642
    %v645 = vrsqrt.pop %v643
    %v647 = vlaneseq
    %v648 = vshrl.u32 %v647, 7
    %v649 = vsub.s32 0, %v648
    %v650 = vrot.slane %v109, %v649
    %v651 = vlaneseq
    %v652 = vshrl.u32 %v651, 7
    %v653 = vsub.s32 1, %v652
    %v654 = vrot.slane %v109, %v653
    %v657 = vmul.f32 %v644, %v650
    %v658 = vmul.f32 %v645, %v654
    %v659 = vmul.f32 %v560, %v657
    %v660 = vmul.f32 %v561, %v658
    %v663 = vcombine.low %v659, %v660
    %v665 = vunpack.c.l.s4 1966171168
    %v666 = vunpack.c.0.s8 %v665
    %v667 = vlaneseq
    %v668 = vshrl.u32 %v667, 7
    %v669 = vsub.s32 %v666, %v668
    %v670 = vrot.slane %v663, %v669
    %v672 = vunpack.c.l.s4 1966171168
    %v673 = vunpack.c.0.s8 %v672
    %v674 = vlaneseq
    %v675 = vshrl.u32 %v674, 7
    %v676 = vsub.s32 %v673, %v675
    %v677 = vrot.slane %v670, %v676
    %v679 = vsub.f32 %v110, %v677
    %v680 = vlaneseq
    %v681 = vshrl.u32 %v680, 7
    %v682 = vsub.s32 0, %v681
    %v683 = vrot.slane %v657, %v682
    %v684 = vlaneseq
    %v685 = vshrl.u32 %v684, 7
    %v686 = vsub.s32 0, %v685
    %v687 = vrot.slane %v658, %v686
    %v688 = vmul.f32 %v439, %v683
    %v689 = vmul.f32 %v441, %v687
    %v690 = vmul.f32 %v443, %v683
    %v691 = vmul.f32 %v445, %v687
    %v692 = vmul.f32 %v449, %v683
    %v693 = vmul.f32 %v451, %v687
    %v694 = vmul.f32 %v453, %v683
    %v695 = vmul.f32 %v455, %v687
    %v696 = vmul.f32 %v459, %v683
    %v697 = vmul.f32 %v461, %v687
    %v698 = vmul.f32 %v463, %v683
    %v699 = vmul.f32 %v465, %v687
    %v700 = vmul.f32 %v469, %v683
    %v701 = vmul.f32 %v471, %v687
    %v702 = vmul.f32 %v473, %v683
    %v703 = vmul.f32 %v475, %v687
    %v704 = vmul.f32 %v479, %v683
    %v705 = vmul.f32 %v481, %v687
    %v706 = vmul.f32 %v483, %v683
    %v707 = vmul.f32 %v485, %v687
    %v708 = vmul.f32 %v489, %v683
    %v709 = vmul.f32 %v491, %v687
    %v710 = vmul.f32 %v493, %v683
    %v711 = vmul.f32 %v495, %v687
    %v712 = vmul.f32 %v499, %v683
    %v713 = vmul.f32 %v501, %v687
    %v714 = vmul.f32 %v503, %v683
    %v715 = vmul.f32 %v505, %v687
    %v716 = vmul.f32 %v509, %v683
    %v717 = vmul.f32 %v511, %v687
    %v718 = vmul.f32 %v513, %v683
    %v719 = vmul.f32 %v515, %v687
    %v721 = vlaneseq
    %v722 = vshrl.u32 %v721, 7
    %v723 = vsub.s32 0, %v722
    %v724 = vrot.slane %v679, %v723
    %v725 = vlaneseq
    %v726 = vshrl.u32 %v725, 7
    %v727 = vsub.s32 1, %v726
    %v728 = vrot.slane %v679, %v727
    %v731 = vadd.f32 %v688, %v724
    %v732 = vadd.f32 %v689, %v728
    %v733 = vadd.f32 %v690, %v724
    %v734 = vadd.f32 %v691, %v728
    %v735 = vadd.f32 %v692, %v724
    %v736 = vadd.f32 %v693, %v728
    %v737 = vadd.f32 %v694, %v724
    %v738 = vadd.f32 %v695, %v728
    %v739 = vadd.f32 %v696, %v724
    %v740 = vadd.f32 %v697, %v728
    %v741 = vadd.f32 %v698, %v724
    %v742 = vadd.f32 %v699, %v728
    %v743 = vadd.f32 %v700, %v724
    %v744 = vadd.f32 %v701, %v728
    %v745 = vadd.f32 %v702, %v724
    %v746 = vadd.f32 %v703, %v728
    %v747 = vadd.f32 %v704, %v724
    %v748 = vadd.f32 %v705, %v728
    %v749 = vadd.f32 %v706, %v724
    %v750 = vadd.f32 %v707, %v728
    %v751 = vadd.f32 %v708, %v724
    %v752 = vadd.f32 %v709, %v728
    %v753 = vadd.f32 %v710, %v724
    %v754 = vadd.f32 %v711, %v728
    %v755 = vadd.f32 %v712, %v724
    %v756 = vadd.f32 %v713, %v728
    %v757 = vadd.f32 %v714, %v724
    %v758 = vadd.f32 %v715, %v728
    %v759 = vadd.f32 %v716, %v724
    %v760 = vadd.f32 %v717, %v728
    %v761 = vadd.f32 %v718, %v724
    %v762 = vadd.f32 %v719, %v728
    %v763 = vmul.f32 %v731, 0.5
    %v764 = vmul.f32 %v732, 0.5
    %v765 = vmul.f32 %v733, 0.5
    %v766 = vmul.f32 %v734, 0.5
    %v767 = vmul.f32 %v735, 0.5
    %v768 = vmul.f32 %v736, 0.5
    %v769 = vmul.f32 %v737, 0.5
    %v770 = vmul.f32 %v738, 0.5
    %v771 = vmul.f32 %v739, 0.5
    %v772 = vmul.f32 %v740, 0.5
    %v773 = vmul.f32 %v741, 0.5
    %v774 = vmul.f32 %v742, 0.5
    %v775 = vmul.f32 %v743, 0.5
    %v776 = vmul.f32 %v744, 0.5
    %v777 = vmul.f32 %v745, 0.5
    %v778 = vmul.f32 %v746, 0.5
    %v779 = vmul.f32 %v747, 0.5
    %v780 = vmul.f32 %v748, 0.5
    %v781 = vmul.f32 %v749, 0.5
    %v782 = vmul.f32 %v750, 0.5
    %v783 = vmul.f32 %v751, 0.5
    %v784 = vmul.f32 %v752, 0.5
    %v785 = vmul.f32 %v753, 0.5
    %v786 = vmul.f32 %v754, 0.5
    %v787 = vmul.f32 %v755, 0.5
    %v788 = vmul.f32 %v756, 0.5
    %v789 = vmul.f32 %v757, 0.5
    %v790 = vmul.f32 %v758, 0.5
    %v791 = vmul.f32 %v759, 0.5
    %v792 = vmul.f32 %v760, 0.5
    %v793 = vmul.f32 %v761, 0.5
    %v794 = vmul.f32 %v762, 0.5
    %v795 = vtanh.pop %v763
    %v796 = vtanh.pop %v764
    %v797 = vtanh.pop %v765
    %v798 = vtanh.pop %v766
    %v799 = vtanh.pop %v767
    %v800 = vtanh.pop %v768
    %v801 = vtanh.pop %v769
    %v802 = vtanh.pop %v770
    %v803 = vtanh.pop %v771
    %v804 = vtanh.pop %v772
    %v805 = vtanh.pop %v773
    %v806 = vtanh.pop %v774
    %v807 = vtanh.pop %v775
    %v808 = vtanh.pop %v776
    %v809 = vtanh.pop %v777
    %v810 = vtanh.pop %v778
    %v811 = vtanh.pop %v779
    %v812 = vtanh.pop %v780
    %v813 = vtanh.pop %v781
    %v814 = vtanh.pop %v782
    %v815 = vtanh.pop %v783
    %v816 = vtanh.pop %v784
    %v817 = vtanh.pop %v785
    %v818 = vtanh.pop %v786
    %v819 = vtanh.pop %v787
    %v820 = vtanh.pop %v788
    %v821 = vtanh.pop %v789
    %v822 = vtanh.pop %v790
    %v823 = vtanh.pop %v791
    %v824 = vtanh.pop %v792
    %v825 = vtanh.pop %v793
    %v826 = vtanh.pop %v794
    %v827 = vmul.f32 %v795, 0.5
    %v828 = vmul.f32 %v796, 0.5
    %v829 = vmul.f32 %v797, 0.5
    %v830 = vmul.f32 %v798, 0.5
    %v831 = vmul.f32 %v799, 0.5
    %v832 = vmul.f32 %v800, 0.5
    %v833 = vmul.f32 %v801, 0.5
    %v834 = vmul.f32 %v802, 0.5
    %v835 = vmul.f32 %v803, 0.5
    %v836 = vmul.f32 %v804, 0.5
    %v837 = vmul.f32 %v805, 0.5
    %v838 = vmul.f32 %v806, 0.5
    %v839 = vmul.f32 %v807, 0.5
    %v840 = vmul.f32 %v808, 0.5
    %v841 = vmul.f32 %v809, 0.5
    %v842 = vmul.f32 %v810, 0.5
    %v843 = vmul.f32 %v811, 0.5
    %v844 = vmul.f32 %v812, 0.5
    %v845 = vmul.f32 %v813, 0.5
    %v846 = vmul.f32 %v814, 0.5
    %v847 = vmul.f32 %v815, 0.5
    %v848 = vmul.f32 %v816, 0.5
    %v849 = vmul.f32 %v817, 0.5
    %v850 = vmul.f32 %v818, 0.5
    %v851 = vmul.f32 %v819, 0.5
    %v852 = vmul.f32 %v820, 0.5
    %v853 = vmul.f32 %v821, 0.5
    %v854 = vmul.f32 %v822, 0.5
    %v855 = vmul.f32 %v823, 0.5
    %v856 = vmul.f32 %v824, 0.5
    %v857 = vmul.f32 %v825, 0.5
    %v858 = vmul.f32 %v826, 0.5
    %v859 = vadd.f32 %v827, 0.5
    %v860 = vadd.f32 %v828, 0.5
    %v861 = vadd.f32 %v829, 0.5
    %v862 = vadd.f32 %v830, 0.5
    %v863 = vadd.f32 %v831, 0.5
    %v864 = vadd.f32 %v832, 0.5
    %v865 = vadd.f32 %v833, 0.5
    %v866 = vadd.f32 %v834, 0.5
    %v867 = vadd.f32 %v835, 0.5
    %v868 = vadd.f32 %v836, 0.5
    %v869 = vadd.f32 %v837, 0.5
    %v870 = vadd.f32 %v838, 0.5
    %v871 = vadd.f32 %v839, 0.5
    %v872 = vadd.f32 %v840, 0.5
    %v873 = vadd.f32 %v841, 0.5
    %v874 = vadd.f32 %v842, 0.5
    %v875 = vadd.f32 %v843, 0.5
    %v876 = vadd.f32 %v844, 0.5
    %v877 = vadd.f32 %v845, 0.5
    %v878 = vadd.f32 %v846, 0.5
    %v879 = vadd.f32 %v847, 0.5
    %v880 = vadd.f32 %v848, 0.5
    %v881 = vadd.f32 %v849, 0.5
    %v882 = vadd.f32 %v850, 0.5
    %v883 = vadd.f32 %v851, 0.5
    %v884 = vadd.f32 %v852, 0.5
    %v885 = vadd.f32 %v853, 0.5
    %v886 = vadd.f32 %v854, 0.5
    %v887 = vadd.f32 %v855, 0.5
    %v888 = vadd.f32 %v856, 0.5
    %v889 = vadd.f32 %v857, 0.5
    %v890 = vadd.f32 %v858, 0.5
    %v891 = vpack.c.bf16 %v861, %v859
    %v892 = vpack.c.bf16 %v862, %v860
    %v893 = vpack.c.bf16 %v865, %v863
    %v894 = vpack.c.bf16 %v866, %v864
    %v895 = vpack.c.bf16 %v869, %v867
    %v896 = vpack.c.bf16 %v870, %v868
    %v897 = vpack.c.bf16 %v873, %v871
    %v898 = vpack.c.bf16 %v874, %v872
    %v899 = vpack.c.bf16 %v877, %v875
    %v900 = vpack.c.bf16 %v878, %v876
    %v901 = vpack.c.bf16 %v881, %v879
    %v902 = vpack.c.bf16 %v882, %v880
    %v903 = vpack.c.bf16 %v885, %v883
    %v904 = vpack.c.bf16 %v886, %v884
    %v905 = vpack.c.bf16 %v889, %v887
    %v906 = vpack.c.bf16 %v890, %v888
    %v907 = vld [vmem:[#allocation10] sm:$0xff]
    %v908 = vld [vmem:[#allocation10 + $0x8] sm:$0xff]
    %v909 = vld [vmem:[#allocation10 + $0x10] sm:$0xff]
    %v910 = vld [vmem:[#allocation10 + $0x18] sm:$0xff]
    %v911 = vld [vmem:[#allocation10 + $0x20] sm:$0xff]
    %v912 = vld [vmem:[#allocation10 + $0x28] sm:$0xff]
    %v913 = vld [vmem:[#allocation10 + $0x30] sm:$0xff]
    %v914 = vld [vmem:[#allocation10 + $0x38] sm:$0xff]
    %v915 = vld [vmem:[#allocation10 + $0x40] sm:$0xff]
    %v916 = vld [vmem:[#allocation10 + $0x48] sm:$0xff]
    %v917 = vld [vmem:[#allocation10 + $0x50] sm:$0xff]
    %v918 = vld [vmem:[#allocation10 + $0x58] sm:$0xff]
    %v919 = vld [vmem:[#allocation10 + $0x60] sm:$0xff]
    %v920 = vld [vmem:[#allocation10 + $0x68] sm:$0xff]
    %v921 = vld [vmem:[#allocation10 + $0x70] sm:$0xff]
    %v922 = vld [vmem:[#allocation10 + $0x78] sm:$0xff]
    %v923 = vld [vmem:[#allocation10 + $0x80] sm:$0xff]
    %v924 = vld [vmem:[#allocation10 + $0x88] sm:$0xff]
    %v925 = vld [vmem:[#allocation10 + $0x90] sm:$0xff]
    %v926 = vld [vmem:[#allocation10 + $0x98] sm:$0xff]
    %v927 = vld [vmem:[#allocation10 + $0xa0] sm:$0xff]
    %v928 = vld [vmem:[#allocation10 + $0xa8] sm:$0xff]
    %v929 = vld [vmem:[#allocation10 + $0xb0] sm:$0xff]
    %v930 = vld [vmem:[#allocation10 + $0xb8] sm:$0xff]
    %v931 = vld [vmem:[#allocation10 + $0xc0] sm:$0xff]
    %v932 = vld [vmem:[#allocation10 + $0xc8] sm:$0xff]
    %v933 = vld [vmem:[#allocation10 + $0xd0] sm:$0xff]
    %v934 = vld [vmem:[#allocation10 + $0xd8] sm:$0xff]
    %v935 = vld [vmem:[#allocation10 + $0xe0] sm:$0xff]
    %v936 = vld [vmem:[#allocation10 + $0xe8] sm:$0xff]
    %v937 = vld [vmem:[#allocation10 + $0xf0] sm:$0xff]
    %v938 = vld [vmem:[#allocation10 + $0xf8] sm:$0xff]
    %v971 = vunpack.c.l.b16 %v907
    %v972 = vunpack.c.h.b16 %v907
    %v973 = vunpack.c.l.b16 %v908
    %v974 = vunpack.c.h.b16 %v908
    %v975 = vunpack.c.l.b16 %v909
    %v976 = vunpack.c.h.b16 %v909
    %v977 = vunpack.c.l.b16 %v910
    %v978 = vunpack.c.h.b16 %v910
    %v979 = vunpack.c.l.b16 %v911
    %v980 = vunpack.c.h.b16 %v911
    %v981 = vunpack.c.l.b16 %v912
    %v982 = vunpack.c.h.b16 %v912
    %v983 = vunpack.c.l.b16 %v913
    %v984 = vunpack.c.h.b16 %v913
    %v985 = vunpack.c.l.b16 %v914
    %v986 = vunpack.c.h.b16 %v914
    %v987 = vunpack.c.l.b16 %v915
    %v988 = vunpack.c.h.b16 %v915
    %v989 = vunpack.c.l.b16 %v916
    %v990 = vunpack.c.h.b16 %v916
    %v991 = vunpack.c.l.b16 %v917
    %v992 = vunpack.c.h.b16 %v917
    %v993 = vunpack.c.l.b16 %v918
    %v994 = vunpack.c.h.b16 %v918
    %v995 = vunpack.c.l.b16 %v919
    %v996 = vunpack.c.h.b16 %v919
    %v997 = vunpack.c.l.b16 %v920
    %v998 = vunpack.c.h.b16 %v920
    %v999 = vunpack.c.l.b16 %v921
    %v1000 = vunpack.c.h.b16 %v921
    %v1001 = vunpack.c.l.b16 %v922
    %v1002 = vunpack.c.h.b16 %v922
    %v1003 = vunpack.c.l.b16 %v923
    %v1004 = vunpack.c.h.b16 %v923
    %v1005 = vunpack.c.l.b16 %v924
    %v1006 = vunpack.c.h.b16 %v924
    %v1007 = vunpack.c.l.b16 %v925
    %v1008 = vunpack.c.h.b16 %v925
    %v1009 = vunpack.c.l.b16 %v926
    %v1010 = vunpack.c.h.b16 %v926
    %v1011 = vunpack.c.l.b16 %v927
    %v1012 = vunpack.c.h.b16 %v927
    %v1013 = vunpack.c.l.b16 %v928
    %v1014 = vunpack.c.h.b16 %v928
    %v1015 = vunpack.c.l.b16 %v929
    %v1016 = vunpack.c.h.b16 %v929
    %v1017 = vunpack.c.l.b16 %v930
    %v1018 = vunpack.c.h.b16 %v930
    %v1019 = vunpack.c.l.b16 %v931
    %v1020 = vunpack.c.h.b16 %v931
    %v1021 = vunpack.c.l.b16 %v932
    %v1022 = vunpack.c.h.b16 %v932
    %v1023 = vunpack.c.l.b16 %v933
    %v1024 = vunpack.c.h.b16 %v933
    %v1025 = vunpack.c.l.b16 %v934
    %v1026 = vunpack.c.h.b16 %v934
    %v1027 = vunpack.c.l.b16 %v935
    %v1028 = vunpack.c.h.b16 %v935
    %v1029 = vunpack.c.l.b16 %v936
    %v1030 = vunpack.c.h.b16 %v936
    %v1031 = vunpack.c.l.b16 %v937
    %v1032 = vunpack.c.h.b16 %v937
    %v1033 = vunpack.c.l.b16 %v938
    %v1034 = vunpack.c.h.b16 %v938
    %v1035 = vpack.c.b16 %v973, %v971
    %v1036 = vpack.c.b16 %v974, %v972
    %v1037 = vpack.c.b16 %v977, %v975
    %v1038 = vpack.c.b16 %v978, %v976
    %v1039 = vpack.c.b16 %v981, %v979
    %v1040 = vpack.c.b16 %v982, %v980
    %v1041 = vpack.c.b16 %v985, %v983
    %v1042 = vpack.c.b16 %v986, %v984
    %v1043 = vpack.c.b16 %v989, %v987
    %v1044 = vpack.c.b16 %v990, %v988
    %v1045 = vpack.c.b16 %v993, %v991
    %v1046 = vpack.c.b16 %v994, %v992
    %v1047 = vpack.c.b16 %v997, %v995
    %v1048 = vpack.c.b16 %v998, %v996
    %v1049 = vpack.c.b16 %v1001, %v999
    %v1050 = vpack.c.b16 %v1002, %v1000
    %v1051 = vpack.c.b16 %v1005, %v1003
    %v1052 = vpack.c.b16 %v1006, %v1004
    %v1053 = vpack.c.b16 %v1009, %v1007
    %v1054 = vpack.c.b16 %v1010, %v1008
    %v1055 = vpack.c.b16 %v1013, %v1011
    %v1056 = vpack.c.b16 %v1014, %v1012
    %v1057 = vpack.c.b16 %v1017, %v1015
    %v1058 = vpack.c.b16 %v1018, %v1016
    %v1059 = vpack.c.b16 %v1021, %v1019
    %v1060 = vpack.c.b16 %v1022, %v1020
    %v1061 = vpack.c.b16 %v1025, %v1023
    %v1062 = vpack.c.b16 %v1026, %v1024
    %v1063 = vpack.c.b16 %v1029, %v1027
    %v1064 = vpack.c.b16 %v1030, %v1028
    %v1065 = vpack.c.b16 %v1033, %v1031
    %v1066 = vpack.c.b16 %v1034, %v1032
    %1099 = vmatprep.subr.bf16.mxu0 %v1036
    %1100 = vmatpush1.bf16.msra.mxu0 %v1035
    %1101 = vmatprep.subr.bf16.mxu0 %v1038
    %1102 = vmatpush1.bf16.msra.mxu0 %v1037
    %1103 = vmatprep.subr.bf16.mxu0 %v1040
    %1104 = vmatpush1.bf16.msra.mxu0 %v1039
    %1105 = vmatprep.subr.bf16.mxu0 %v1042
    %1106 = vmatpush1.bf16.msra.mxu0 %v1041
    %1107 = vmatprep.subr.bf16.mxu0 %v1044
    %1108 = vmatpush1.bf16.msra.mxu0 %v1043
    %1109 = vmatprep.subr.bf16.mxu0 %v1046
    %1110 = vmatpush1.bf16.msra.mxu0 %v1045
    %1111 = vmatprep.subr.bf16.mxu0 %v1048
    %1112 = vmatpush1.bf16.msra.mxu0 %v1047
    %1113 = vmatprep.subr.bf16.mxu0 %v1050
    %1114 = vmatpush1.bf16.msra.mxu0 %v1049
    %1115 = vmatprep.subr.bf16.mxu0 %v1052
    %1116 = vmatpush1.bf16.msra.mxu0 %v1051
    %1117 = vmatprep.subr.bf16.mxu0 %v1054
    %1118 = vmatpush1.bf16.msra.mxu0 %v1053
    %1119 = vmatprep.subr.bf16.mxu0 %v1056
    %1120 = vmatpush1.bf16.msra.mxu0 %v1055
    %1121 = vmatprep.subr.bf16.mxu0 %v1058
    %1122 = vmatpush1.bf16.msra.mxu0 %v1057
    %1123 = vmatprep.subr.bf16.mxu0 %v1060
    %1124 = vmatpush1.bf16.msra.mxu0 %v1059
    %1125 = vmatprep.subr.bf16.mxu0 %v1062
    %1126 = vmatpush1.bf16.msra.mxu0 %v1061
    %1127 = vmatprep.subr.bf16.mxu0 %v1064
    %1128 = vmatpush1.bf16.msra.mxu0 %v1063
    %1129 = vmatprep.subr.bf16.mxu0 %v1066
    %1130 = vmatpush1.bf16.msra.mxu0 %v1065
    %1131 = vmatprep.mubr.bf16.mxu0 %v892
    %1132 = vmatmul.mubr.bf16.gmra.mrb[0].mxu0 %v891
    %v1133 = vpop.f32.mrb[0].mxu0
    %v1134 = vadd.f32 0.0, %v1133
    %v1135 = vpop.f32.mrb[0].mxu0
    %v1136 = vadd.f32 0.0, %v1135
    %v1137 = vpop.f32.mrb[0].mxu0
    %v1138 = vadd.f32 0.0, %v1137
    %v1139 = vpop.f32.mrb[0].mxu0
    %v1140 = vadd.f32 0.0, %v1139
    %1141 = vmatprep.mubr.bf16.mxu0 %v894
    %1142 = vmatmul.mubr.bf16.gmra.mrb[0].mxu0 %v893
    %v1143 = vpop.f32.mrb[0].mxu0
    %v1144 = vadd.f32 0.0, %v1143
    %v1145 = vpop.f32.mrb[0].mxu0
    %v1146 = vadd.f32 0.0, %v1145
    %v1147 = vpop.f32.mrb[0].mxu0
    %v1148 = vadd.f32 0.0, %v1147
    %v1149 = vpop.f32.mrb[0].mxu0
    %v1150 = vadd.f32 0.0, %v1149
    %1151 = vmatprep.mubr.bf16.mxu0 %v896
    %1152 = vmatmul.mubr.bf16.gmra.mrb[0].mxu0 %v895
    %v1153 = vpop.f32.mrb[0].mxu0
    %v1154 = vadd.f32 0.0, %v1153
    %v1155 = vpop.f32.mrb[0].mxu0
    %v1156 = vadd.f32 0.0, %v1155
    %v1157 = vpop.f32.mrb[0].mxu0
    %v1158 = vadd.f32 0.0, %v1157
    %v1159 = vpop.f32.mrb[0].mxu0
    %v1160 = vadd.f32 0.0, %v1159
    %1161 = vmatprep.mubr.bf16.mxu0 %v898
    %1162 = vmatmul.mubr.bf16.gmra.mrb[0].mxu0 %v897
    %v1163 = vpop.f32.mrb[0].mxu0
    %v1164 = vadd.f32 0.0, %v1163
    %v1165 = vpop.f32.mrb[0].mxu0
    %v1166 = vadd.f32 0.0, %v1165
    %v1167 = vpop.f32.mrb[0].mxu0
    %v1168 = vadd.f32 0.0, %v1167
    %v1169 = vpop.f32.mrb[0].mxu0
    %v1170 = vadd.f32 0.0, %v1169
    %1171 = vmatprep.mubr.bf16.mxu0 %v900
    %1172 = vmatmul.mubr.bf16.gmra.mrb[0].mxu0 %v899
    %v1173 = vpop.f32.mrb[0].mxu0
    %v1174 = vadd.f32 0.0, %v1173
    %v1175 = vpop.f32.mrb[0].mxu0
    %v1176 = vadd.f32 0.0, %v1175
    %v1177 = vpop.f32.mrb[0].mxu0
    %v1178 = vadd.f32 0.0, %v1177
    %v1179 = vpop.f32.mrb[0].mxu0
    %v1180 = vadd.f32 0.0, %v1179
    %1181 = vmatprep.mubr.bf16.mxu0 %v902
    %1182 = vmatmul.mubr.bf16.gmra.mrb[0].mxu0 %v901
    %v1183 = vpop.f32.mrb[0].mxu0
    %v1184 = vadd.f32 0.0, %v1183
    %v1185 = vpop.f32.mrb[0].mxu0
    %v1186 = vadd.f32 0.0, %v1185
    %v1187 = vpop.f32.mrb[0].mxu0
    %v1188 = vadd.f32 0.0, %v1187
    %v1189 = vpop.f32.mrb[0].mxu0
    %v1190 = vadd.f32 0.0, %v1189
    %1191 = vmatprep.mubr.bf16.mxu0 %v904
    %1192 = vmatmul.mubr.bf16.gmra.mrb[0].mxu0 %v903
    %v1193 = vpop.f32.mrb[0].mxu0
    %v1194 = vadd.f32 0.0, %v1193
    %v1195 = vpop.f32.mrb[0].mxu0
    %v1196 = vadd.f32 0.0, %v1195
    %v1197 = vpop.f32.mrb[0].mxu0
    %v1198 = vadd.f32 0.0, %v1197
    %v1199 = vpop.f32.mrb[0].mxu0
    %v1200 = vadd.f32 0.0, %v1199
    %1201 = vmatprep.mubr.bf16.mxu0 %v906
    %1202 = vmatmul.mubr.bf16.gmra.mrb[0].mxu0 %v905
    %v1203 = vpop.f32.mrb[0].mxu0
    %v1204 = vadd.f32 0.0, %v1203
    %v1205 = vpop.f32.mrb[0].mxu0
    %v1206 = vadd.f32 0.0, %v1205
    %v1207 = vpop.f32.mrb[0].mxu0
    %v1208 = vadd.f32 0.0, %v1207
    %v1209 = vpop.f32.mrb[0].mxu0
    %v1210 = vadd.f32 0.0, %v1209
    %1211 = vdwg.mxu0
    %v1212 = vadd.f32 %v1134, %v1138
    %v1213 = vadd.f32 %v1212, %v1144
    %v1214 = vadd.f32 %v1213, %v1148
    %v1215 = vadd.f32 %v1214, %v1154
    %v1216 = vadd.f32 %v1215, %v1158
    %v1217 = vadd.f32 %v1216, %v1164
    %v1218 = vadd.f32 %v1217, %v1168
    %v1219 = vadd.f32 %v1218, %v1174
    %v1220 = vadd.f32 %v1219, %v1178
    %v1221 = vadd.f32 %v1220, %v1184
    %v1222 = vadd.f32 %v1221, %v1188
    %v1223 = vadd.f32 %v1222, %v1194
    %v1224 = vadd.f32 %v1223, %v1198
    %v1225 = vadd.f32 %v1224, %v1204
    %v1226 = vadd.f32 %v1225, %v1208
    %v1227 = vrot.slane %v1226, 4
    %v1228 = vadd.f32 %v1226, %v1227
    %v1229 = vrot.slane %v1228, 2
    %v1230 = vadd.f32 %v1228, %v1229
    %v1231 = vrot.slane %v1230, 1
    %v1232 = vadd.f32 %v1230, %v1231
    %v1233 = vadd.f32 %v1136, %v1140
    %v1234 = vadd.f32 %v1233, %v1146
    %v1235 = vadd.f32 %v1234, %v1150
    %v1236 = vadd.f32 %v1235, %v1156
    %v1237 = vadd.f32 %v1236, %v1160
    %v1238 = vadd.f32 %v1237, %v1166
    %v1239 = vadd.f32 %v1238, %v1170
    %v1240 = vadd.f32 %v1239, %v1176
    %v1241 = vadd.f32 %v1240, %v1180
    %v1242 = vadd.f32 %v1241, %v1186
    %v1243 = vadd.f32 %v1242, %v1190
    %v1244 = vadd.f32 %v1243, %v1196
    %v1245 = vadd.f32 %v1244, %v1200
    %v1246 = vadd.f32 %v1245, %v1206
    %v1247 = vadd.f32 %v1246, %v1210
    %v1248 = vrot.slane %v1247, 4
    %v1249 = vadd.f32 %v1247, %v1248
    %v1250 = vrot.slane %v1249, 2
    %v1251 = vadd.f32 %v1249, %v1250
    %v1252 = vrot.slane %v1251, 1
    %v1253 = vadd.f32 %v1251, %v1252
    %v1254 = vmul.f32 %v1232, %v559
    %v1255 = vmul.f32 %v1253, %v559
    %v1256 = vmul.f32 %v1134, %v1134
    %v1257 = vmul.f32 %v1136, %v1136
    %v1258 = vmul.f32 %v1138, %v1138
    %v1259 = vmul.f32 %v1140, %v1140
    %v1260 = vmul.f32 %v1144, %v1144
    %v1261 = vmul.f32 %v1146, %v1146
    %v1262 = vmul.f32 %v1148, %v1148
    %v1263 = vmul.f32 %v1150, %v1150
    %v1264 = vmul.f32 %v1154, %v1154
    %v1265 = vmul.f32 %v1156, %v1156
    %v1266 = vmul.f32 %v1158, %v1158
    %v1267 = vmul.f32 %v1160, %v1160
    %v1268 = vmul.f32 %v1164, %v1164
    %v1269 = vmul.f32 %v1166, %v1166
    %v1270 = vmul.f32 %v1168, %v1168
    %v1271 = vmul.f32 %v1170, %v1170
    %v1272 = vmul.f32 %v1174, %v1174
    %v1273 = vmul.f32 %v1176, %v1176
    %v1274 = vmul.f32 %v1178, %v1178
    %v1275 = vmul.f32 %v1180, %v1180
    %v1276 = vmul.f32 %v1184, %v1184
    %v1277 = vmul.f32 %v1186, %v1186
    %v1278 = vmul.f32 %v1188, %v1188
    %v1279 = vmul.f32 %v1190, %v1190
    %v1280 = vmul.f32 %v1194, %v1194
    %v1281 = vmul.f32 %v1196, %v1196
    %v1282 = vmul.f32 %v1198, %v1198
    %v1283 = vmul.f32 %v1200, %v1200
    %v1284 = vmul.f32 %v1204, %v1204
    %v1285 = vmul.f32 %v1206, %v1206
    %v1286 = vmul.f32 %v1208, %v1208
    %v1287 = vmul.f32 %v1210, %v1210
    %v1288 = vadd.f32 %v1256, %v1258
    %v1289 = vadd.f32 %v1288, %v1260
    %v1290 = vadd.f32 %v1289, %v1262
    %v1291 = vadd.f32 %v1290, %v1264
    %v1292 = vadd.f32 %v1291, %v1266
    %v1293 = vadd.f32 %v1292, %v1268
    %v1294 = vadd.f32 %v1293, %v1270
    %v1295 = vadd.f32 %v1294, %v1272
    %v1296 = vadd.f32 %v1295, %v1274
    %v1297 = vadd.f32 %v1296, %v1276
    %v1298 = vadd.f32 %v1297, %v1278
    %v1299 = vadd.f32 %v1298, %v1280
    %v1300 = vadd.f32 %v1299, %v1282
    %v1301 = vadd.f32 %v1300, %v1284
    %v1302 = vadd.f32 %v1301, %v1286
    %v1303 = vrot.slane %v1302, 4
    %v1304 = vadd.f32 %v1302, %v1303
    %v1305 = vrot.slane %v1304, 2
    %v1306 = vadd.f32 %v1304, %v1305
    %v1307 = vrot.slane %v1306, 1
    %v1308 = vadd.f32 %v1306, %v1307
    %v1309 = vadd.f32 %v1257, %v1259
    %v1310 = vadd.f32 %v1309, %v1261
    %v1311 = vadd.f32 %v1310, %v1263
    %v1312 = vadd.f32 %v1311, %v1265
    %v1313 = vadd.f32 %v1312, %v1267
    %v1314 = vadd.f32 %v1313, %v1269
    %v1315 = vadd.f32 %v1314, %v1271
    %v1316 = vadd.f32 %v1315, %v1273
    %v1317 = vadd.f32 %v1316, %v1275
    %v1318 = vadd.f32 %v1317, %v1277
    %v1319 = vadd.f32 %v1318, %v1279
    %v1320 = vadd.f32 %v1319, %v1281
    %v1321 = vadd.f32 %v1320, %v1283
    %v1322 = vadd.f32 %v1321, %v1285
    %v1323 = vadd.f32 %v1322, %v1287
    %v1324 = vrot.slane %v1323, 4
    %v1325 = vadd.f32 %v1323, %v1324
    %v1326 = vrot.slane %v1325, 2
    %v1327 = vadd.f32 %v1325, %v1326
    %v1328 = vrot.slane %v1327, 1
    %v1329 = vadd.f32 %v1327, %v1328
    %v1330 = vmul.f32 %v1308, %v559
    %v1331 = vmul.f32 %v1329, %v559
    %v1332 = vmul.f32 %v1254, %v1254
    %v1333 = vmul.f32 %v1255, %v1255
    %v1334 = vsub.f32 %v1330, %v1332
    %v1335 = vsub.f32 %v1331, %v1333
    %v1336 = vadd.f32 %v1334, 1e-05
    %v1337 = vadd.f32 %v1335, 1e-05
    %v1338 = vrsqrt.pop %v1336
    %v1339 = vrsqrt.pop %v1337
    %v1341 = vlaneseq
    %v1342 = vshrl.u32 %v1341, 7
    %v1343 = vsub.s32 0, %v1342
    %v1344 = vrot.slane %v111, %v1343
    %v1345 = vlaneseq
    %v1346 = vshrl.u32 %v1345, 7
    %v1347 = vsub.s32 1, %v1346
    %v1348 = vrot.slane %v111, %v1347
    %v1351 = vmul.f32 %v1338, %v1344
    %v1352 = vmul.f32 %v1339, %v1348
    %v1353 = vmul.f32 %v1254, %v1351
    %v1354 = vmul.f32 %v1255, %v1352
    %v1357 = vcombine.low %v1353, %v1354
    %v1359 = vunpack.c.l.s4 1966171168
    %v1360 = vunpack.c.0.s8 %v1359
    %v1361 = vlaneseq
    %v1362 = vshrl.u32 %v1361, 7
    %v1363 = vsub.s32 %v1360, %v1362
    %v1364 = vrot.slane %v1357, %v1363
    %v1366 = vunpack.c.l.s4 1966171168
    %v1367 = vunpack.c.0.s8 %v1366
    %v1368 = vlaneseq
    %v1369 = vshrl.u32 %v1368, 7
    %v1370 = vsub.s32 %v1367, %v1369
    %v1371 = vrot.slane %v1364, %v1370
    %v1373 = vsub.f32 %v112, %v1371
    %v1374 = vlaneseq
    %v1375 = vshrl.u32 %v1374, 7
    %v1376 = vsub.s32 0, %v1375
    %v1377 = vrot.slane %v1351, %v1376
    %v1378 = vlaneseq
    %v1379 = vshrl.u32 %v1378, 7
    %v1380 = vsub.s32 0, %v1379
    %v1381 = vrot.slane %v1352, %v1380
    %v1382 = vmul.f32 %v1134, %v1377
    %v1383 = vmul.f32 %v1136, %v1381
    %v1384 = vmul.f32 %v1138, %v1377
    %v1385 = vmul.f32 %v1140, %v1381
    %v1386 = vmul.f32 %v1144, %v1377
    %v1387 = vmul.f32 %v1146, %v1381
    %v1388 = vmul.f32 %v1148, %v1377
    %v1389 = vmul.f32 %v1150, %v1381
    %v1390 = vmul.f32 %v1154, %v1377
    %v1391 = vmul.f32 %v1156, %v1381
    %v1392 = vmul.f32 %v1158, %v1377
    %v1393 = vmul.f32 %v1160, %v1381
    %v1394 = vmul.f32 %v1164, %v1377
    %v1395 = vmul.f32 %v1166, %v1381
    %v1396 = vmul.f32 %v1168, %v1377
    %v1397 = vmul.f32 %v1170, %v1381
    %v1398 = vmul.f32 %v1174, %v1377
    %v1399 = vmul.f32 %v1176, %v1381
    %v1400 = vmul.f32 %v1178, %v1377
    %v1401 = vmul.f32 %v1180, %v1381
    %v1402 = vmul.f32 %v1184, %v1377
    %v1403 = vmul.f32 %v1186, %v1381
    %v1404 = vmul.f32 %v1188, %v1377
    %v1405 = vmul.f32 %v1190, %v1381
    %v1406 = vmul.f32 %v1194, %v1377
    %v1407 = vmul.f32 %v1196, %v1381
    %v1408 = vmul.f32 %v1198, %v1377
    %v1409 = vmul.f32 %v1200, %v1381
    %v1410 = vmul.f32 %v1204, %v1377
    %v1411 = vmul.f32 %v1206, %v1381
    %v1412 = vmul.f32 %v1208, %v1377
    %v1413 = vmul.f32 %v1210, %v1381
    %v1415 = vlaneseq
    %v1416 = vshrl.u32 %v1415, 7
    %v1417 = vsub.s32 0, %v1416
    %v1418 = vrot.slane %v1373, %v1417
    %v1419 = vlaneseq
    %v1420 = vshrl.u32 %v1419, 7
    %v1421 = vsub.s32 1, %v1420
    %v1422 = vrot.slane %v1373, %v1421
    %v1425 = vadd.f32 %v1382, %v1418
    %v1426 = vadd.f32 %v1383, %v1422
    %v1427 = vadd.f32 %v1384, %v1418
    %v1428 = vadd.f32 %v1385, %v1422
    %v1429 = vadd.f32 %v1386, %v1418
    %v1430 = vadd.f32 %v1387, %v1422
    %v1431 = vadd.f32 %v1388, %v1418
    %v1432 = vadd.f32 %v1389, %v1422
    %v1433 = vadd.f32 %v1390, %v1418
    %v1434 = vadd.f32 %v1391, %v1422
    %v1435 = vadd.f32 %v1392, %v1418
    %v1436 = vadd.f32 %v1393, %v1422
    %v1437 = vadd.f32 %v1394, %v1418
    %v1438 = vadd.f32 %v1395, %v1422
    %v1439 = vadd.f32 %v1396, %v1418
    %v1440 = vadd.f32 %v1397, %v1422
    %v1441 = vadd.f32 %v1398, %v1418
    %v1442 = vadd.f32 %v1399, %v1422
    %v1443 = vadd.f32 %v1400, %v1418
    %v1444 = vadd.f32 %v1401, %v1422
    %v1445 = vadd.f32 %v1402, %v1418
    %v1446 = vadd.f32 %v1403, %v1422
    %v1447 = vadd.f32 %v1404, %v1418
    %v1448 = vadd.f32 %v1405, %v1422
    %v1449 = vadd.f32 %v1406, %v1418
    %v1450 = vadd.f32 %v1407, %v1422
    %v1451 = vadd.f32 %v1408, %v1418
    %v1452 = vadd.f32 %v1409, %v1422
    %v1453 = vadd.f32 %v1410, %v1418
    %v1454 = vadd.f32 %v1411, %v1422
    %v1455 = vadd.f32 %v1412, %v1418
    %v1456 = vadd.f32 %v1413, %v1422
    %v1457 = vmul.f32 %v1425, 0.5
    %v1458 = vmul.f32 %v1426, 0.5
    %v1459 = vmul.f32 %v1427, 0.5
    %v1460 = vmul.f32 %v1428, 0.5
    %v1461 = vmul.f32 %v1429, 0.5
    %v1462 = vmul.f32 %v1430, 0.5
    %v1463 = vmul.f32 %v1431, 0.5
    %v1464 = vmul.f32 %v1432, 0.5
    %v1465 = vmul.f32 %v1433, 0.5
    %v1466 = vmul.f32 %v1434, 0.5
    %v1467 = vmul.f32 %v1435, 0.5
    %v1468 = vmul.f32 %v1436, 0.5
    %v1469 = vmul.f32 %v1437, 0.5
    %v1470 = vmul.f32 %v1438, 0.5
    %v1471 = vmul.f32 %v1439, 0.5
    %v1472 = vmul.f32 %v1440, 0.5
    %v1473 = vmul.f32 %v1441, 0.5
    %v1474 = vmul.f32 %v1442, 0.5
    %v1475 = vmul.f32 %v1443, 0.5
    %v1476 = vmul.f32 %v1444, 0.5
    %v1477 = vmul.f32 %v1445, 0.5
    %v1478 = vmul.f32 %v1446, 0.5
    %v1479 = vmul.f32 %v1447, 0.5
    %v1480 = vmul.f32 %v1448, 0.5
    %v1481 = vmul.f32 %v1449, 0.5
    %v1482 = vmul.f32 %v1450, 0.5
    %v1483 = vmul.f32 %v1451, 0.5
    %v1484 = vmul.f32 %v1452, 0.5
    %v1485 = vmul.f32 %v1453, 0.5
    %v1486 = vmul.f32 %v1454, 0.5
    %v1487 = vmul.f32 %v1455, 0.5
    %v1488 = vmul.f32 %v1456, 0.5
    %v1489 = vtanh.pop %v1457
    %v1490 = vtanh.pop %v1458
    %v1491 = vtanh.pop %v1459
    %v1492 = vtanh.pop %v1460
    %v1493 = vtanh.pop %v1461
    %v1494 = vtanh.pop %v1462
    %v1495 = vtanh.pop %v1463
    %v1496 = vtanh.pop %v1464
    %v1497 = vtanh.pop %v1465
    %v1498 = vtanh.pop %v1466
    %v1499 = vtanh.pop %v1467
    %v1500 = vtanh.pop %v1468
    %v1501 = vtanh.pop %v1469
    %v1502 = vtanh.pop %v1470
    %v1503 = vtanh.pop %v1471
    %v1504 = vtanh.pop %v1472
    %v1505 = vtanh.pop %v1473
    %v1506 = vtanh.pop %v1474
    %v1507 = vtanh.pop %v1475
    %v1508 = vtanh.pop %v1476
    %v1509 = vtanh.pop %v1477
    %v1510 = vtanh.pop %v1478
    %v1511 = vtanh.pop %v1479
    %v1512 = vtanh.pop %v1480
    %v1513 = vtanh.pop %v1481
    %v1514 = vtanh.pop %v1482
    %v1515 = vtanh.pop %v1483
    %v1516 = vtanh.pop %v1484
    %v1517 = vtanh.pop %v1485
    %v1518 = vtanh.pop %v1486
    %v1519 = vtanh.pop %v1487
    %v1520 = vtanh.pop %v1488
    %v1521 = vmul.f32 %v1489, 0.5
    %v1522 = vmul.f32 %v1490, 0.5
    %v1523 = vmul.f32 %v1491, 0.5
    %v1524 = vmul.f32 %v1492, 0.5
    %v1525 = vmul.f32 %v1493, 0.5
    %v1526 = vmul.f32 %v1494, 0.5
    %v1527 = vmul.f32 %v1495, 0.5
    %v1528 = vmul.f32 %v1496, 0.5
    %v1529 = vmul.f32 %v1497, 0.5
    %v1530 = vmul.f32 %v1498, 0.5
    %v1531 = vmul.f32 %v1499, 0.5
    %v1532 = vmul.f32 %v1500, 0.5
    %v1533 = vmul.f32 %v1501, 0.5
    %v1534 = vmul.f32 %v1502, 0.5
    %v1535 = vmul.f32 %v1503, 0.5
    %v1536 = vmul.f32 %v1504, 0.5
    %v1537 = vmul.f32 %v1505, 0.5
    %v1538 = vmul.f32 %v1506, 0.5
    %v1539 = vmul.f32 %v1507, 0.5
    %v1540 = vmul.f32 %v1508, 0.5
    %v1541 = vmul.f32 %v1509, 0.5
    %v1542 = vmul.f32 %v1510, 0.5
    %v1543 = vmul.f32 %v1511, 0.5
    %v1544 = vmul.f32 %v1512, 0.5
    %v1545 = vmul.f32 %v1513, 0.5
    %v1546 = vmul.f32 %v1514, 0.5
    %v1547 = vmul.f32 %v1515, 0.5
    %v1548 = vmul.f32 %v1516, 0.5
    %v1549 = vmul.f32 %v1517, 0.5
    %v1550 = vmul.f32 %v1518, 0.5
    %v1551 = vmul.f32 %v1519, 0.5
    %v1552 = vmul.f32 %v1520, 0.5
    %v1553 = vadd.f32 %v1521, 0.5
    %v1554 = vadd.f32 %v1522, 0.5
    %v1555 = vadd.f32 %v1523, 0.5
    %v1556 = vadd.f32 %v1524, 0.5
    %v1557 = vadd.f32 %v1525, 0.5
    %v1558 = vadd.f32 %v1526, 0.5
    %v1559 = vadd.f32 %v1527, 0.5
    %v1560 = vadd.f32 %v1528, 0.5
    %v1561 = vadd.f32 %v1529, 0.5
    %v1562 = vadd.f32 %v1530, 0.5
    %v1563 = vadd.f32 %v1531, 0.5
    %v1564 = vadd.f32 %v1532, 0.5
    %v1565 = vadd.f32 %v1533, 0.5
    %v1566 = vadd.f32 %v1534, 0.5
    %v1567 = vadd.f32 %v1535, 0.5
    %v1568 = vadd.f32 %v1536, 0.5
    %v1569 = vadd.f32 %v1537, 0.5
    %v1570 = vadd.f32 %v1538, 0.5
    %v1571 = vadd.f32 %v1539, 0.5
    %v1572 = vadd.f32 %v1540, 0.5
    %v1573 = vadd.f32 %v1541, 0.5
    %v1574 = vadd.f32 %v1542, 0.5
    %v1575 = vadd.f32 %v1543, 0.5
    %v1576 = vadd.f32 %v1544, 0.5
    %v1577 = vadd.f32 %v1545, 0.5
    %v1578 = vadd.f32 %v1546, 0.5
    %v1579 = vadd.f32 %v1547, 0.5
    %v1580 = vadd.f32 %v1548, 0.5
    %v1581 = vadd.f32 %v1549, 0.5
    %v1582 = vadd.f32 %v1550, 0.5
    %v1583 = vadd.f32 %v1551, 0.5
    %v1584 = vadd.f32 %v1552, 0.5
    %v1585 = vpack.c.bf16 %v1555, %v1553
    %v1586 = vpack.c.bf16 %v1556, %v1554
    %v1587 = vpack.c.bf16 %v1559, %v1557
    %v1588 = vpack.c.bf16 %v1560, %v1558
    %v1589 = vpack.c.bf16 %v1563, %v1561
    %v1590 = vpack.c.bf16 %v1564, %v1562
    %v1591 = vpack.c.bf16 %v1567, %v1565
    %v1592 = vpack.c.bf16 %v1568, %v1566
    %v1593 = vpack.c.bf16 %v1571, %v1569
    %v1594 = vpack.c.bf16 %v1572, %v1570
    %v1595 = vpack.c.bf16 %v1575, %v1573
    %v1596 = vpack.c.bf16 %v1576, %v1574
    %v1597 = vpack.c.bf16 %v1579, %v1577
    %v1598 = vpack.c.bf16 %v1580, %v1578
    %v1599 = vpack.c.bf16 %v1583, %v1581
    %v1600 = vpack.c.bf16 %v1584, %v1582
    %s1601 = smul.u32 4, 32
    %s1602 = smul.u32 %s1601, 4
    %s1603 = sshll.u32 %s1602, 4
    %1604 = dma.done [#allocation4], %s1603
    %v1605 = vld [vmem:[#allocation2] sm:$0xff]
    %v1606 = vld [vmem:[#allocation2 + $0x8] sm:$0xff]
    %v1607 = vld [vmem:[#allocation2 + $0x10] sm:$0xff]
    %v1608 = vld [vmem:[#allocation2 + $0x18] sm:$0xff]
    %v1609 = vld [vmem:[#allocation2 + $0x20] sm:$0xff]
    %v1610 = vld [vmem:[#allocation2 + $0x28] sm:$0xff]
    %v1611 = vld [vmem:[#allocation2 + $0x30] sm:$0xff]
    %v1612 = vld [vmem:[#allocation2 + $0x38] sm:$0xff]
    %v1613 = vld [vmem:[#allocation2 + $0x40] sm:$0xff]
    %v1614 = vld [vmem:[#allocation2 + $0x48] sm:$0xff]
    %v1615 = vld [vmem:[#allocation2 + $0x50] sm:$0xff]
    %v1616 = vld [vmem:[#allocation2 + $0x58] sm:$0xff]
    %v1617 = vld [vmem:[#allocation2 + $0x60] sm:$0xff]
    %v1618 = vld [vmem:[#allocation2 + $0x68] sm:$0xff]
    %v1619 = vld [vmem:[#allocation2 + $0x70] sm:$0xff]
    %v1620 = vld [vmem:[#allocation2 + $0x78] sm:$0xff]
    %v1621 = vld [vmem:[#allocation2 + $0x80] sm:$0xff]
    %v1622 = vld [vmem:[#allocation2 + $0x88] sm:$0xff]
    %v1623 = vld [vmem:[#allocation2 + $0x90] sm:$0xff]
    %v1624 = vld [vmem:[#allocation2 + $0x98] sm:$0xff]
    %v1625 = vld [vmem:[#allocation2 + $0xa0] sm:$0xff]
    %v1626 = vld [vmem:[#allocation2 + $0xa8] sm:$0xff]
    %v1627 = vld [vmem:[#allocation2 + $0xb0] sm:$0xff]
    %v1628 = vld [vmem:[#allocation2 + $0xb8] sm:$0xff]
    %v1629 = vld [vmem:[#allocation2 + $0xc0] sm:$0xff]
    %v1630 = vld [vmem:[#allocation2 + $0xc8] sm:$0xff]
    %v1631 = vld [vmem:[#allocation2 + $0xd0] sm:$0xff]
    %v1632 = vld [vmem:[#allocation2 + $0xd8] sm:$0xff]
    %v1633 = vld [vmem:[#allocation2 + $0xe0] sm:$0xff]
    %v1634 = vld [vmem:[#allocation2 + $0xe8] sm:$0xff]
    %v1635 = vld [vmem:[#allocation2 + $0xf0] sm:$0xff]
    %v1636 = vld [vmem:[#allocation2 + $0xf8] sm:$0xff]
    %v1637 = vld [vmem:[#allocation2 + $0x100] sm:$0xff]
    %v1638 = vld [vmem:[#allocation2 + $0x108] sm:$0xff]
    %v1639 = vld [vmem:[#allocation2 + $0x110] sm:$0xff]
    %v1640 = vld [vmem:[#allocation2 + $0x118] sm:$0xff]
    %v1641 = vld [vmem:[#allocation2 + $0x120] sm:$0xff]
    %v1642 = vld [vmem:[#allocation2 + $0x128] sm:$0xff]
    %v1643 = vld [vmem:[#allocation2 + $0x130] sm:$0xff]
    %v1644 = vld [vmem:[#allocation2 + $0x138] sm:$0xff]
    %v1645 = vld [vmem:[#allocation2 + $0x140] sm:$0xff]
    %v1646 = vld [vmem:[#allocation2 + $0x148] sm:$0xff]
    %v1647 = vld [vmem:[#allocation2 + $0x150] sm:$0xff]
    %v1648 = vld [vmem:[#allocation2 + $0x158] sm:$0xff]
    %v1649 = vld [vmem:[#allocation2 + $0x160] sm:$0xff]
    %v1650 = vld [vmem:[#allocation2 + $0x168] sm:$0xff]
    %v1651 = vld [vmem:[#allocation2 + $0x170] sm:$0xff]
    %v1652 = vld [vmem:[#allocation2 + $0x178] sm:$0xff]
    %v1653 = vld [vmem:[#allocation2 + $0x180] sm:$0xff]
    %v1654 = vld [vmem:[#allocation2 + $0x188] sm:$0xff]
    %v1655 = vld [vmem:[#allocation2 + $0x190] sm:$0xff]
    %v1656 = vld [vmem:[#allocation2 + $0x198] sm:$0xff]
    %v1657 = vld [vmem:[#allocation2 + $0x1a0] sm:$0xff]
    %v1658 = vld [vmem:[#allocation2 + $0x1a8] sm:$0xff]
    %v1659 = vld [vmem:[#allocation2 + $0x1b0] sm:$0xff]
    %v1660 = vld [vmem:[#allocation2 + $0x1b8] sm:$0xff]
    %v1661 = vld [vmem:[#allocation2 + $0x1c0] sm:$0xff]
    %v1662 = vld [vmem:[#allocation2 + $0x1c8] sm:$0xff]
    %v1663 = vld [vmem:[#allocation2 + $0x1d0] sm:$0xff]
    %v1664 = vld [vmem:[#allocation2 + $0x1d8] sm:$0xff]
    %v1665 = vld [vmem:[#allocation2 + $0x1e0] sm:$0xff]
    %v1666 = vld [vmem:[#allocation2 + $0x1e8] sm:$0xff]
    %v1667 = vld [vmem:[#allocation2 + $0x1f0] sm:$0xff]
    %v1668 = vld [vmem:[#allocation2 + $0x1f8] sm:$0xff]
    %1669 = vmatprep.subr.bf16.mxu0 %v1606
    %1670 = vmatpush1.bf16.msra.mxu0 %v1605
    %1671 = vmatprep.subr.bf16.mxu0 %v1610
    %1672 = vmatpush1.bf16.msra.mxu0 %v1609
    %1673 = vmatprep.subr.bf16.mxu0 %v1614
    %1674 = vmatpush1.bf16.msra.mxu0 %v1613
    %1675 = vmatprep.subr.bf16.mxu0 %v1618
    %1676 = vmatpush1.bf16.msra.mxu0 %v1617
    %1677 = vmatprep.subr.bf16.mxu0 %v1622
    %1678 = vmatpush1.bf16.msra.mxu0 %v1621
    %1679 = vmatprep.subr.bf16.mxu0 %v1626
    %1680 = vmatpush1.bf16.msra.mxu0 %v1625
    %1681 = vmatprep.subr.bf16.mxu0 %v1630
    %1682 = vmatpush1.bf16.msra.mxu0 %v1629
    %1683 = vmatprep.subr.bf16.mxu0 %v1634
    %1684 = vmatpush1.bf16.msra.mxu0 %v1633
    %1685 = vmatprep.subr.bf16.mxu0 %v1638
    %1686 = vmatpush1.bf16.msra.mxu0 %v1637
    %1687 = vmatprep.subr.bf16.mxu0 %v1642
    %1688 = vmatpush1.bf16.msra.mxu0 %v1641
    %1689 = vmatprep.subr.bf16.mxu0 %v1646
    %1690 = vmatpush1.bf16.msra.mxu0 %v1645
    %1691 = vmatprep.subr.bf16.mxu0 %v1650
    %1692 = vmatpush1.bf16.msra.mxu0 %v1649
    %1693 = vmatprep.subr.bf16.mxu0 %v1654
    %1694 = vmatpush1.bf16.msra.mxu0 %v1653
    %1695 = vmatprep.subr.bf16.mxu0 %v1658
    %1696 = vmatpush1.bf16.msra.mxu0 %v1657
    %1697 = vmatprep.subr.bf16.mxu0 %v1662
    %1698 = vmatpush1.bf16.msra.mxu0 %v1661
    %1699 = vmatprep.subr.bf16.mxu0 %v1666
    %1700 = vmatpush1.bf16.msra.mxu0 %v1665
    %1701 = vmatprep.mubr.bf16.mxu0 %v1586
    %1702 = vmatmul.mubr.bf16.gmra.mrb[0].mxu0 %v1585
    %v1703 = vpop.f32.mrb[0].mxu0
    %v1704 = vadd.f32 0.0, %v1703
    %v1705 = vpop.f32.mrb[0].mxu0
    %v1706 = vadd.f32 0.0, %v1705
    %v1707 = vpop.f32.mrb[0].mxu0
    %v1708 = vadd.f32 0.0, %v1707
    %v1709 = vpop.f32.mrb[0].mxu0
    %v1710 = vadd.f32 0.0, %v1709
    %1711 = vmatprep.mubr.bf16.mxu0 %v1588
    %1712 = vmatmul.mubr.bf16.gmra.mrb[0].mxu0 %v1587
    %v1713 = vpop.f32.mrb[0].mxu0
    %v1714 = vadd.f32 0.0, %v1713
    %v1715 = vpop.f32.mrb[0].mxu0
    %v1716 = vadd.f32 0.0, %v1715
    %v1717 = vpop.f32.mrb[0].mxu0
    %v1718 = vadd.f32 0.0, %v1717
    %v1719 = vpop.f32.mrb[0].mxu0
    %v1720 = vadd.f32 0.0, %v1719
    %1721 = vmatprep.mubr.bf16.mxu0 %v1590
    %1722 = vmatmul.mubr.bf16.gmra.mrb[0].mxu0 %v1589
    %v1723 = vpop.f32.mrb[0].mxu0
    %v1724 = vadd.f32 0.0, %v1723
    %v1725 = vpop.f32.mrb[0].mxu0
    %v1726 = vadd.f32 0.0, %v1725
    %v1727 = vpop.f32.mrb[0].mxu0
    %v1728 = vadd.f32 0.0, %v1727
    %v1729 = vpop.f32.mrb[0].mxu0
    %v1730 = vadd.f32 0.0, %v1729
    %1731 = vmatprep.mubr.bf16.mxu0 %v1592
    %1732 = vmatmul.mubr.bf16.gmra.mrb[0].mxu0 %v1591
    %v1733 = vpop.f32.mrb[0].mxu0
    %v1734 = vadd.f32 0.0, %v1733
    %v1735 = vpop.f32.mrb[0].mxu0
    %v1736 = vadd.f32 0.0, %v1735
    %v1737 = vpop.f32.mrb[0].mxu0
    %v1738 = vadd.f32 0.0, %v1737
    %v1739 = vpop.f32.mrb[0].mxu0
    %v1740 = vadd.f32 0.0, %v1739
    %1741 = vmatprep.mubr.bf16.mxu0 %v1594
    %1742 = vmatmul.mubr.bf16.gmra.mrb[0].mxu0 %v1593
    %v1743 = vpop.f32.mrb[0].mxu0
    %v1744 = vadd.f32 0.0, %v1743
    %v1745 = vpop.f32.mrb[0].mxu0
    %v1746 = vadd.f32 0.0, %v1745
    %v1747 = vpop.f32.mrb[0].mxu0
    %v1748 = vadd.f32 0.0, %v1747
    %v1749 = vpop.f32.mrb[0].mxu0
    %v1750 = vadd.f32 0.0, %v1749
    %1751 = vmatprep.mubr.bf16.mxu0 %v1596
    %1752 = vmatmul.mubr.bf16.gmra.mrb[0].mxu0 %v1595
    %v1753 = vpop.f32.mrb[0].mxu0
    %v1754 = vadd.f32 0.0, %v1753
    %v1755 = vpop.f32.mrb[0].mxu0
    %v1756 = vadd.f32 0.0, %v1755
    %v1757 = vpop.f32.mrb[0].mxu0
    %v1758 = vadd.f32 0.0, %v1757
    %v1759 = vpop.f32.mrb[0].mxu0
    %v1760 = vadd.f32 0.0, %v1759
    %1761 = vmatprep.mubr.bf16.mxu0 %v1598
    %1762 = vmatmul.mubr.bf16.gmra.mrb[0].mxu0 %v1597
    %v1763 = vpop.f32.mrb[0].mxu0
    %v1764 = vadd.f32 0.0, %v1763
    %v1765 = vpop.f32.mrb[0].mxu0
    %v1766 = vadd.f32 0.0, %v1765
    %v1767 = vpop.f32.mrb[0].mxu0
    %v1768 = vadd.f32 0.0, %v1767
    %v1769 = vpop.f32.mrb[0].mxu0
    %v1770 = vadd.f32 0.0, %v1769
    %1771 = vmatprep.mubr.bf16.mxu0 %v1600
    %1772 = vmatmul.mubr.bf16.gmra.mrb[0].mxu0 %v1599
    %v1773 = vpop.f32.mrb[0].mxu0
    %v1774 = vadd.f32 0.0, %v1773
    %v1775 = vpop.f32.mrb[0].mxu0
    %v1776 = vadd.f32 0.0, %v1775
    %v1777 = vpop.f32.mrb[0].mxu0
    %v1778 = vadd.f32 0.0, %v1777
    %v1779 = vpop.f32.mrb[0].mxu0
    %v1780 = vadd.f32 0.0, %v1779
    %1781 = vdwg.mxu0
    %1782 = vmatprep.subr.bf16.mxu0 %v1608
    %1783 = vmatpush1.bf16.msra.mxu0 %v1607
    %1784 = vmatprep.subr.bf16.mxu0 %v1612
    %1785 = vmatpush1.bf16.msra.mxu0 %v1611
    %1786 = vmatprep.subr.bf16.mxu0 %v1616
    %1787 = vmatpush1.bf16.msra.mxu0 %v1615
    %1788 = vmatprep.subr.bf16.mxu0 %v1620
    %1789 = vmatpush1.bf16.msra.mxu0 %v1619
    %1790 = vmatprep.subr.bf16.mxu0 %v1624
    %1791 = vmatpush1.bf16.msra.mxu0 %v1623
    %1792 = vmatprep.subr.bf16.mxu0 %v1628
    %1793 = vmatpush1.bf16.msra.mxu0 %v1627
    %1794 = vmatprep.subr.bf16.mxu0 %v1632
    %1795 = vmatpush1.bf16.msra.mxu0 %v1631
    %1796 = vmatprep.subr.bf16.mxu0 %v1636
    %1797 = vmatpush1.bf16.msra.mxu0 %v1635
    %1798 = vmatprep.subr.bf16.mxu0 %v1640
    %1799 = vmatpush1.bf16.msra.mxu0 %v1639
    %1800 = vmatprep.subr.bf16.mxu0 %v1644
    %1801 = vmatpush1.bf16.msra.mxu0 %v1643
    %1802 = vmatprep.subr.bf16.mxu0 %v1648
    %1803 = vmatpush1.bf16.msra.mxu0 %v1647
    %1804 = vmatprep.subr.bf16.mxu0 %v1652
    %1805 = vmatpush1.bf16.msra.mxu0 %v1651
    %1806 = vmatprep.subr.bf16.mxu0 %v1656
    %1807 = vmatpush1.bf16.msra.mxu0 %v1655
    %1808 = vmatprep.subr.bf16.mxu0 %v1660
    %1809 = vmatpush1.bf16.msra.mxu0 %v1659
    %1810 = vmatprep.subr.bf16.mxu0 %v1664
    %1811 = vmatpush1.bf16.msra.mxu0 %v1663
    %1812 = vmatprep.subr.bf16.mxu0 %v1668
    %1813 = vmatpush1.bf16.msra.mxu0 %v1667
    %1814 = vmatprep.mubr.bf16.mxu0 %v1586
    %1815 = vmatmul.mubr.bf16.gmra.mrb[0].mxu0 %v1585
    %v1816 = vpop.f32.mrb[0].mxu0
    %v1817 = vadd.f32 0.0, %v1816
    %v1818 = vpop.f32.mrb[0].mxu0
    %v1819 = vadd.f32 0.0, %v1818
    %v1820 = vpop.f32.mrb[0].mxu0
    %v1821 = vadd.f32 0.0, %v1820
    %v1822 = vpop.f32.mrb[0].mxu0
    %v1823 = vadd.f32 0.0, %v1822
    %1824 = vmatprep.mubr.bf16.mxu0 %v1588
    %1825 = vmatmul.mubr.bf16.gmra.mrb[0].mxu0 %v1587
    %v1826 = vpop.f32.mrb[0].mxu0
    %v1827 = vadd.f32 0.0, %v1826
    %v1828 = vpop.f32.mrb[0].mxu0
    %v1829 = vadd.f32 0.0, %v1828
    %v1830 = vpop.f32.mrb[0].mxu0
    %v1831 = vadd.f32 0.0, %v1830
    %v1832 = vpop.f32.mrb[0].mxu0
    %v1833 = vadd.f32 0.0, %v1832
    %1834 = vmatprep.mubr.bf16.mxu0 %v1590
    %1835 = vmatmul.mubr.bf16.gmra.mrb[0].mxu0 %v1589
    %v1836 = vpop.f32.mrb[0].mxu0
    %v1837 = vadd.f32 0.0, %v1836
    %v1838 = vpop.f32.mrb[0].mxu0
    %v1839 = vadd.f32 0.0, %v1838
    %v1840 = vpop.f32.mrb[0].mxu0
    %v1841 = vadd.f32 0.0, %v1840
    %v1842 = vpop.f32.mrb[0].mxu0
    %v1843 = vadd.f32 0.0, %v1842
    %1844 = vmatprep.mubr.bf16.mxu0 %v1592
    %1845 = vmatmul.mubr.bf16.gmra.mrb[0].mxu0 %v1591
    %v1846 = vpop.f32.mrb[0].mxu0
    %v1847 = vadd.f32 0.0, %v1846
    %v1848 = vpop.f32.mrb[0].mxu0
    %v1849 = vadd.f32 0.0, %v1848
    %v1850 = vpop.f32.mrb[0].mxu0
    %v1851 = vadd.f32 0.0, %v1850
    %v1852 = vpop.f32.mrb[0].mxu0
    %v1853 = vadd.f32 0.0, %v1852
    %1854 = vmatprep.mubr.bf16.mxu0 %v1594
    %1855 = vmatmul.mubr.bf16.gmra.mrb[0].mxu0 %v1593
    %v1856 = vpop.f32.mrb[0].mxu0
    %v1857 = vadd.f32 0.0, %v1856
    %v1858 = vpop.f32.mrb[0].mxu0
    %v1859 = vadd.f32 0.0, %v1858
    %v1860 = vpop.f32.mrb[0].mxu0
    %v1861 = vadd.f32 0.0, %v1860
    %v1862 = vpop.f32.mrb[0].mxu0
    %v1863 = vadd.f32 0.0, %v1862
    %1864 = vmatprep.mubr.bf16.mxu0 %v1596
    %1865 = vmatmul.mubr.bf16.gmra.mrb[0].mxu0 %v1595
    %v1866 = vpop.f32.mrb[0].mxu0
    %v1867 = vadd.f32 0.0, %v1866
    %v1868 = vpop.f32.mrb[0].mxu0
    %v1869 = vadd.f32 0.0, %v1868
    %v1870 = vpop.f32.mrb[0].mxu0
    %v1871 = vadd.f32 0.0, %v1870
    %v1872 = vpop.f32.mrb[0].mxu0
    %v1873 = vadd.f32 0.0, %v1872
    %1874 = vmatprep.mubr.bf16.mxu0 %v1598
    %1875 = vmatmul.mubr.bf16.gmra.mrb[0].mxu0 %v1597
    %v1876 = vpop.f32.mrb[0].mxu0
    %v1877 = vadd.f32 0.0, %v1876
    %v1878 = vpop.f32.mrb[0].mxu0
    %v1879 = vadd.f32 0.0, %v1878
    %v1880 = vpop.f32.mrb[0].mxu0
    %v1881 = vadd.f32 0.0, %v1880
    %v1882 = vpop.f32.mrb[0].mxu0
    %v1883 = vadd.f32 0.0, %v1882
    %1884 = vmatprep.mubr.bf16.mxu0 %v1600
    %1885 = vmatmul.mubr.bf16.gmra.mrb[0].mxu0 %v1599
    %v1886 = vpop.f32.mrb[0].mxu0
    %v1887 = vadd.f32 0.0, %v1886
    %v1888 = vpop.f32.mrb[0].mxu0
    %v1889 = vadd.f32 0.0, %v1888
    %v1890 = vpop.f32.mrb[0].mxu0
    %v1891 = vadd.f32 0.0, %v1890
    %v1892 = vpop.f32.mrb[0].mxu0
    %v1893 = vadd.f32 0.0, %v1892
    %1894 = vdwg.mxu0
    %v1895 = vadd.f32 %v1704, %v1708
    %v1896 = vadd.f32 %v1895, %v1714
    %v1897 = vadd.f32 %v1896, %v1718
    %v1898 = vadd.f32 %v1897, %v1724
    %v1899 = vadd.f32 %v1898, %v1728
    %v1900 = vadd.f32 %v1899, %v1734
    %v1901 = vadd.f32 %v1900, %v1738
    %v1902 = vadd.f32 %v1901, %v1744
    %v1903 = vadd.f32 %v1902, %v1748
    %v1904 = vadd.f32 %v1903, %v1754
    %v1905 = vadd.f32 %v1904, %v1758
    %v1906 = vadd.f32 %v1905, %v1764
    %v1907 = vadd.f32 %v1906, %v1768
    %v1908 = vadd.f32 %v1907, %v1774
    %v1909 = vadd.f32 %v1908, %v1778
    %v1910 = vrot.slane %v1909, 4
    %v1911 = vadd.f32 %v1909, %v1910
    %v1912 = vrot.slane %v1911, 2
    %v1913 = vadd.f32 %v1911, %v1912
    %v1914 = vrot.slane %v1913, 1
    %v1915 = vadd.f32 %v1913, %v1914
    %v1916 = vadd.f32 %v1706, %v1710
    %v1917 = vadd.f32 %v1916, %v1716
    %v1918 = vadd.f32 %v1917, %v1720
    %v1919 = vadd.f32 %v1918, %v1726
    %v1920 = vadd.f32 %v1919, %v1730
    %v1921 = vadd.f32 %v1920, %v1736
    %v1922 = vadd.f32 %v1921, %v1740
    %v1923 = vadd.f32 %v1922, %v1746
    %v1924 = vadd.f32 %v1923, %v1750
    %v1925 = vadd.f32 %v1924, %v1756
    %v1926 = vadd.f32 %v1925, %v1760
    %v1927 = vadd.f32 %v1926, %v1766
    %v1928 = vadd.f32 %v1927, %v1770
    %v1929 = vadd.f32 %v1928, %v1776
    %v1930 = vadd.f32 %v1929, %v1780
    %v1931 = vrot.slane %v1930, 4
    %v1932 = vadd.f32 %v1930, %v1931
    %v1933 = vrot.slane %v1932, 2
    %v1934 = vadd.f32 %v1932, %v1933
    %v1935 = vrot.slane %v1934, 1
    %v1936 = vadd.f32 %v1934, %v1935
    %v1937 = vadd.f32 %v1817, %v1821
    %v1938 = vadd.f32 %v1937, %v1827
    %v1939 = vadd.f32 %v1938, %v1831
    %v1940 = vadd.f32 %v1939, %v1837
    %v1941 = vadd.f32 %v1940, %v1841
    %v1942 = vadd.f32 %v1941, %v1847
    %v1943 = vadd.f32 %v1942, %v1851
    %v1944 = vadd.f32 %v1943, %v1857
    %v1945 = vadd.f32 %v1944, %v1861
    %v1946 = vadd.f32 %v1945, %v1867
    %v1947 = vadd.f32 %v1946, %v1871
    %v1948 = vadd.f32 %v1947, %v1877
    %v1949 = vadd.f32 %v1948, %v1881
    %v1950 = vadd.f32 %v1949, %v1887
    %v1951 = vadd.f32 %v1950, %v1891
    %v1952 = vrot.slane %v1951, 4
    %v1953 = vadd.f32 %v1951, %v1952
    %v1954 = vrot.slane %v1953, 2
    %v1955 = vadd.f32 %v1953, %v1954
    %v1956 = vrot.slane %v1955, 1
    %v1957 = vadd.f32 %v1955, %v1956
    %v1958 = vadd.f32 %v1819, %v1823
    %v1959 = vadd.f32 %v1958, %v1829
    %v1960 = vadd.f32 %v1959, %v1833
    %v1961 = vadd.f32 %v1960, %v1839
    %v1962 = vadd.f32 %v1961, %v1843
    %v1963 = vadd.f32 %v1962, %v1849
    %v1964 = vadd.f32 %v1963, %v1853
    %v1965 = vadd.f32 %v1964, %v1859
    %v1966 = vadd.f32 %v1965, %v1863
    %v1967 = vadd.f32 %v1966, %v1869
    %v1968 = vadd.f32 %v1967, %v1873
    %v1969 = vadd.f32 %v1968, %v1879
    %v1970 = vadd.f32 %v1969, %v1883
    %v1971 = vadd.f32 %v1970, %v1889
    %v1972 = vadd.f32 %v1971, %v1893
    %v1973 = vrot.slane %v1972, 4
    %v1974 = vadd.f32 %v1972, %v1973
    %v1975 = vrot.slane %v1974, 2
    %v1976 = vadd.f32 %v1974, %v1975
    %v1977 = vrot.slane %v1976, 1
    %v1978 = vadd.f32 %v1976, %v1977
    %v1979 = vmul.f32 %v1915, %v559
    %v1980 = vmul.f32 %v1936, %v559
    %v1981 = vmul.f32 %v1957, %v559
    %v1982 = vmul.f32 %v1978, %v559
    %v1983 = vmul.f32 %v1704, %v1704
    %v1984 = vmul.f32 %v1706, %v1706
    %v1985 = vmul.f32 %v1817, %v1817
    %v1986 = vmul.f32 %v1819, %v1819
    %v1987 = vmul.f32 %v1708, %v1708
    %v1988 = vmul.f32 %v1710, %v1710
    %v1989 = vmul.f32 %v1821, %v1821
    %v1990 = vmul.f32 %v1823, %v1823
    %v1991 = vmul.f32 %v1714, %v1714
    %v1992 = vmul.f32 %v1716, %v1716
    %v1993 = vmul.f32 %v1827, %v1827
    %v1994 = vmul.f32 %v1829, %v1829
    %v1995 = vmul.f32 %v1718, %v1718
    %v1996 = vmul.f32 %v1720, %v1720
    %v1997 = vmul.f32 %v1831, %v1831
    %v1998 = vmul.f32 %v1833, %v1833
    %v1999 = vmul.f32 %v1724, %v1724
    %v2000 = vmul.f32 %v1726, %v1726
    %v2001 = vmul.f32 %v1837, %v1837
    %v2002 = vmul.f32 %v1839, %v1839
    %v2003 = vmul.f32 %v1728, %v1728
    %v2004 = vmul.f32 %v1730, %v1730
    %v2005 = vmul.f32 %v1841, %v1841
    %v2006 = vmul.f32 %v1843, %v1843
    %v2007 = vmul.f32 %v1734, %v1734
    %v2008 = vmul.f32 %v1736, %v1736
    %v2009 = vmul.f32 %v1847, %v1847
    %v2010 = vmul.f32 %v1849, %v1849
    %v2011 = vmul.f32 %v1738, %v1738
    %v2012 = vmul.f32 %v1740, %v1740
    %v2013 = vmul.f32 %v1851, %v1851
    %v2014 = vmul.f32 %v1853, %v1853
    %v2015 = vmul.f32 %v1744, %v1744
    %v2016 = vmul.f32 %v1746, %v1746
    %v2017 = vmul.f32 %v1857, %v1857
    %v2018 = vmul.f32 %v1859, %v1859
    %v2019 = vmul.f32 %v1748, %v1748
    %v2020 = vmul.f32 %v1750, %v1750
    %v2021 = vmul.f32 %v1861, %v1861
    %v2022 = vmul.f32 %v1863, %v1863
    %v2023 = vmul.f32 %v1754, %v1754
    %v2024 = vmul.f32 %v1756, %v1756
    %v2025 = vmul.f32 %v1867, %v1867
    %v2026 = vmul.f32 %v1869, %v1869
    %v2027 = vmul.f32 %v1758, %v1758
    %v2028 = vmul.f32 %v1760, %v1760
    %v2029 = vmul.f32 %v1871, %v1871
    %v2030 = vmul.f32 %v1873, %v1873
    %v2031 = vmul.f32 %v1764, %v1764
    %v2032 = vmul.f32 %v1766, %v1766
    %v2033 = vmul.f32 %v1877, %v1877
    %v2034 = vmul.f32 %v1879, %v1879
    %v2035 = vmul.f32 %v1768, %v1768
    %v2036 = vmul.f32 %v1770, %v1770
    %v2037 = vmul.f32 %v1881, %v1881
    %v2038 = vmul.f32 %v1883, %v1883
    %v2039 = vmul.f32 %v1774, %v1774
    %v2040 = vmul.f32 %v1776, %v1776
    %v2041 = vmul.f32 %v1887, %v1887
    %v2042 = vmul.f32 %v1889, %v1889
    %v2043 = vmul.f32 %v1778, %v1778
    %v2044 = vmul.f32 %v1780, %v1780
    %v2045 = vmul.f32 %v1891, %v1891
    %v2046 = vmul.f32 %v1893, %v1893
    %v2047 = vadd.f32 %v1983, %v1987
    %v2048 = vadd.f32 %v2047, %v1991
    %v2049 = vadd.f32 %v2048, %v1995
    %v2050 = vadd.f32 %v2049, %v1999
    %v2051 = vadd.f32 %v2050, %v2003
    %v2052 = vadd.f32 %v2051, %v2007
    %v2053 = vadd.f32 %v2052, %v2011
    %v2054 = vadd.f32 %v2053, %v2015
    %v2055 = vadd.f32 %v2054, %v2019
    %v2056 = vadd.f32 %v2055, %v2023
    %v2057 = vadd.f32 %v2056, %v2027
    %v2058 = vadd.f32 %v2057, %v2031
    %v2059 = vadd.f32 %v2058, %v2035
    %v2060 = vadd.f32 %v2059, %v2039
    %v2061 = vadd.f32 %v2060, %v2043
    %v2062 = vrot.slane %v2061, 4
    %v2063 = vadd.f32 %v2061, %v2062
    %v2064 = vrot.slane %v2063, 2
    %v2065 = vadd.f32 %v2063, %v2064
    %v2066 = vrot.slane %v2065, 1
    %v2067 = vadd.f32 %v2065, %v2066
    %v2068 = vadd.f32 %v1984, %v1988
    %v2069 = vadd.f32 %v2068, %v1992
    %v2070 = vadd.f32 %v2069, %v1996
    %v2071 = vadd.f32 %v2070, %v2000
    %v2072 = vadd.f32 %v2071, %v2004
    %v2073 = vadd.f32 %v2072, %v2008
    %v2074 = vadd.f32 %v2073, %v2012
    %v2075 = vadd.f32 %v2074, %v2016
    %v2076 = vadd.f32 %v2075, %v2020
    %v2077 = vadd.f32 %v2076, %v2024
    %v2078 = vadd.f32 %v2077, %v2028
    %v2079 = vadd.f32 %v2078, %v2032
    %v2080 = vadd.f32 %v2079, %v2036
    %v2081 = vadd.f32 %v2080, %v2040
    %v2082 = vadd.f32 %v2081, %v2044
    %v2083 = vrot.slane %v2082, 4
    %v2084 = vadd.f32 %v2082, %v2083
    %v2085 = vrot.slane %v2084, 2
    %v2086 = vadd.f32 %v2084, %v2085
    %v2087 = vrot.slane %v2086, 1
    %v2088 = vadd.f32 %v2086, %v2087
    %v2089 = vadd.f32 %v1985, %v1989
    %v2090 = vadd.f32 %v2089, %v1993
    %v2091 = vadd.f32 %v2090, %v1997
    %v2092 = vadd.f32 %v2091, %v2001
    %v2093 = vadd.f32 %v2092, %v2005
    %v2094 = vadd.f32 %v2093, %v2009
    %v2095 = vadd.f32 %v2094, %v2013
    %v2096 = vadd.f32 %v2095, %v2017
    %v2097 = vadd.f32 %v2096, %v2021
    %v2098 = vadd.f32 %v2097, %v2025
    %v2099 = vadd.f32 %v2098, %v2029
    %v2100 = vadd.f32 %v2099, %v2033
    %v2101 = vadd.f32 %v2100, %v2037
    %v2102 = vadd.f32 %v2101, %v2041
    %v2103 = vadd.f32 %v2102, %v2045
    %v2104 = vrot.slane %v2103, 4
    %v2105 = vadd.f32 %v2103, %v2104
    %v2106 = vrot.slane %v2105, 2
    %v2107 = vadd.f32 %v2105, %v2106
    %v2108 = vrot.slane %v2107, 1
    %v2109 = vadd.f32 %v2107, %v2108
    %v2110 = vadd.f32 %v1986, %v1990
    %v2111 = vadd.f32 %v2110, %v1994
    %v2112 = vadd.f32 %v2111, %v1998
    %v2113 = vadd.f32 %v2112, %v2002
    %v2114 = vadd.f32 %v2113, %v2006
    %v2115 = vadd.f32 %v2114, %v2010
    %v2116 = vadd.f32 %v2115, %v2014
    %v2117 = vadd.f32 %v2116, %v2018
    %v2118 = vadd.f32 %v2117, %v2022
    %v2119 = vadd.f32 %v2118, %v2026
    %v2120 = vadd.f32 %v2119, %v2030
    %v2121 = vadd.f32 %v2120, %v2034
    %v2122 = vadd.f32 %v2121, %v2038
    %v2123 = vadd.f32 %v2122, %v2042
    %v2124 = vadd.f32 %v2123, %v2046
    %v2125 = vrot.slane %v2124, 4
    %v2126 = vadd.f32 %v2124, %v2125
    %v2127 = vrot.slane %v2126, 2
    %v2128 = vadd.f32 %v2126, %v2127
    %v2129 = vrot.slane %v2128, 1
    %v2130 = vadd.f32 %v2128, %v2129
    %v2131 = vmul.f32 %v2067, %v559
    %v2132 = vmul.f32 %v2088, %v559
    %v2133 = vmul.f32 %v2109, %v559
    %v2134 = vmul.f32 %v2130, %v559
    %v2135 = vmul.f32 %v1979, %v1979
    %v2136 = vmul.f32 %v1980, %v1980
    %v2137 = vmul.f32 %v1981, %v1981
    %v2138 = vmul.f32 %v1982, %v1982
    %v2139 = vsub.f32 %v2131, %v2135
    %v2140 = vsub.f32 %v2132, %v2136
    %v2141 = vsub.f32 %v2133, %v2137
    %v2142 = vsub.f32 %v2134, %v2138
    %v2143 = vadd.f32 %v2139, 1e-05
    %v2144 = vadd.f32 %v2140, 1e-05
    %v2145 = vadd.f32 %v2141, 1e-05
    %v2146 = vadd.f32 %v2142, 1e-05
    %v2147 = vrsqrt.pop %v2143
    %v2148 = vrsqrt.pop %v2144
    %v2149 = vrsqrt.pop %v2145
    %v2150 = vrsqrt.pop %v2146
    %v2152 = vlaneseq
    %v2153 = vshrl.u32 %v2152, 7
    %v2154 = vsub.s32 0, %v2153
    %v2155 = vrot.slane %v113, %v2154
    %v2156 = vlaneseq
    %v2157 = vshrl.u32 %v2156, 7
    %v2158 = vsub.s32 1, %v2157
    %v2159 = vrot.slane %v113, %v2158
    %v2160 = vlaneseq
    %v2161 = vshrl.u32 %v2160, 7
    %v2162 = vsub.s32 2, %v2161
    %v2163 = vrot.slane %v113, %v2162
    %v2164 = vlaneseq
    %v2165 = vshrl.u32 %v2164, 7
    %v2166 = vsub.s32 3, %v2165
    %v2167 = vrot.slane %v113, %v2166
    %v2172 = vmul.f32 %v2147, %v2155
    %v2173 = vmul.f32 %v2148, %v2159
    %v2174 = vmul.f32 %v2149, %v2163
    %v2175 = vmul.f32 %v2150, %v2167
    %v2176 = vmul.f32 %v1979, %v2172
    %v2177 = vmul.f32 %v1980, %v2173
    %v2178 = vmul.f32 %v1981, %v2174
    %v2179 = vmul.f32 %v1982, %v2175
    %v2184 = vcombine.low %v2176, %v2177
    %v2185 = vcombine.low %v2178, %v2179
    %v2187 = vunpack.c.l.s4 1966171168
    %v2188 = vunpack.c.0.s8 %v2187
    %v2189 = vlaneseq
    %v2190 = vshrl.u32 %v2189, 7
    %v2191 = vsub.s32 %v2188, %v2190
    %v2192 = vrot.slane %v2184, %v2191
    %v2194 = vunpack.c.l.s4 1966171168
    %v2195 = vunpack.c.0.s8 %v2194
    %v2196 = vlaneseq
    %v2197 = vshrl.u32 %v2196, 7
    %v2198 = vsub.s32 %v2195, %v2197
    %v2199 = vrot.slane %v2185, %v2198
    %v2200 = vcombine.low %v2192, %v2199
    %v2202 = vunpack.c.l.s4 1966171168
    %v2203 = vunpack.c.0.s8 %v2202
    %v2204 = vlaneseq
    %v2205 = vshrl.u32 %v2204, 7
    %v2206 = vsub.s32 %v2203, %v2205
    %v2207 = vrot.slane %v2200, %v2206
    %v2209 = vsub.f32 %v114, %v2207
    %v2210 = vlaneseq
    %v2211 = vshrl.u32 %v2210, 7
    %v2212 = vsub.s32 0, %v2211
    %v2213 = vrot.slane %v2172, %v2212
    %v2214 = vlaneseq
    %v2215 = vshrl.u32 %v2214, 7
    %v2216 = vsub.s32 0, %v2215
    %v2217 = vrot.slane %v2173, %v2216
    %v2218 = vlaneseq
    %v2219 = vshrl.u32 %v2218, 7
    %v2220 = vsub.s32 0, %v2219
    %v2221 = vrot.slane %v2174, %v2220
    %v2222 = vlaneseq
    %v2223 = vshrl.u32 %v2222, 7
    %v2224 = vsub.s32 0, %v2223
    %v2225 = vrot.slane %v2175, %v2224
    %v2226 = vmul.f32 %v1704, %v2213
    %v2227 = vmul.f32 %v1706, %v2217
    %v2228 = vmul.f32 %v1817, %v2221
    %v2229 = vmul.f32 %v1819, %v2225
    %v2230 = vmul.f32 %v1708, %v2213
    %v2231 = vmul.f32 %v1710, %v2217
    %v2232 = vmul.f32 %v1821, %v2221
    %v2233 = vmul.f32 %v1823, %v2225
    %v2234 = vmul.f32 %v1714, %v2213
    %v2235 = vmul.f32 %v1716, %v2217
    %v2236 = vmul.f32 %v1827, %v2221
    %v2237 = vmul.f32 %v1829, %v2225
    %v2238 = vmul.f32 %v1718, %v2213
    %v2239 = vmul.f32 %v1720, %v2217
    %v2240 = vmul.f32 %v1831, %v2221
    %v2241 = vmul.f32 %v1833, %v2225
    %v2242 = vmul.f32 %v1724, %v2213
    %v2243 = vmul.f32 %v1726, %v2217
    %v2244 = vmul.f32 %v1837, %v2221
    %v2245 = vmul.f32 %v1839, %v2225
    %v2246 = vmul.f32 %v1728, %v2213
    %v2247 = vmul.f32 %v1730, %v2217
    %v2248 = vmul.f32 %v1841, %v2221
    %v2249 = vmul.f32 %v1843, %v2225
    %v2250 = vmul.f32 %v1734, %v2213
    %v2251 = vmul.f32 %v1736, %v2217
    %v2252 = vmul.f32 %v1847, %v2221
    %v2253 = vmul.f32 %v1849, %v2225
    %v2254 = vmul.f32 %v1738, %v2213
    %v2255 = vmul.f32 %v1740, %v2217
    %v2256 = vmul.f32 %v1851, %v2221
    %v2257 = vmul.f32 %v1853, %v2225
    %v2258 = vmul.f32 %v1744, %v2213
    %v2259 = vmul.f32 %v1746, %v2217
    %v2260 = vmul.f32 %v1857, %v2221
    %v2261 = vmul.f32 %v1859, %v2225
    %v2262 = vmul.f32 %v1748, %v2213
    %v2263 = vmul.f32 %v1750, %v2217
    %v2264 = vmul.f32 %v1861, %v2221
    %v2265 = vmul.f32 %v1863, %v2225
    %v2266 = vmul.f32 %v1754, %v2213
    %v2267 = vmul.f32 %v1756, %v2217
    %v2268 = vmul.f32 %v1867, %v2221
    %v2269 = vmul.f32 %v1869, %v2225
    %v2270 = vmul.f32 %v1758, %v2213
    %v2271 = vmul.f32 %v1760, %v2217
    %v2272 = vmul.f32 %v1871, %v2221
    %v2273 = vmul.f32 %v1873, %v2225
    %v2274 = vmul.f32 %v1764, %v2213
    %v2275 = vmul.f32 %v1766, %v2217
    %v2276 = vmul.f32 %v1877, %v2221
    %v2277 = vmul.f32 %v1879, %v2225
    %v2278 = vmul.f32 %v1768, %v2213
    %v2279 = vmul.f32 %v1770, %v2217
    %v2280 = vmul.f32 %v1881, %v2221
    %v2281 = vmul.f32 %v1883, %v2225
    %v2282 = vmul.f32 %v1774, %v2213
    %v2283 = vmul.f32 %v1776, %v2217
    %v2284 = vmul.f32 %v1887, %v2221
    %v2285 = vmul.f32 %v1889, %v2225
    %v2286 = vmul.f32 %v1778, %v2213
    %v2287 = vmul.f32 %v1780, %v2217
    %v2288 = vmul.f32 %v1891, %v2221
    %v2289 = vmul.f32 %v1893, %v2225
    %v2291 = vlaneseq
    %v2292 = vshrl.u32 %v2291, 7
    %v2293 = vsub.s32 0, %v2292
    %v2294 = vrot.slane %v2209, %v2293
    %v2295 = vlaneseq
    %v2296 = vshrl.u32 %v2295, 7
    %v2297 = vsub.s32 1, %v2296
    %v2298 = vrot.slane %v2209, %v2297
    %v2299 = vlaneseq
    %v2300 = vshrl.u32 %v2299, 7
    %v2301 = vsub.s32 2, %v2300
    %v2302 = vrot.slane %v2209, %v2301
    %v2303 = vlaneseq
    %v2304 = vshrl.u32 %v2303, 7
    %v2305 = vsub.s32 3, %v2304
    %v2306 = vrot.slane %v2209, %v2305
    %v2311 = vadd.f32 %v2226, %v2294
    %v2312 = vadd.f32 %v2227, %v2298
    %v2313 = vadd.f32 %v2228, %v2302
    %v2314 = vadd.f32 %v2229, %v2306
    %v2315 = vadd.f32 %v2230, %v2294
    %v2316 = vadd.f32 %v2231, %v2298
    %v2317 = vadd.f32 %v2232, %v2302
    %v2318 = vadd.f32 %v2233, %v2306
    %v2319 = vadd.f32 %v2234, %v2294
    %v2320 = vadd.f32 %v2235, %v2298
    %v2321 = vadd.f32 %v2236, %v2302
    %v2322 = vadd.f32 %v2237, %v2306
    %v2323 = vadd.f32 %v2238, %v2294
    %v2324 = vadd.f32 %v2239, %v2298
    %v2325 = vadd.f32 %v2240, %v2302
    %v2326 = vadd.f32 %v2241, %v2306
    %v2327 = vadd.f32 %v2242, %v2294
    %v2328 = vadd.f32 %v2243, %v2298
    %v2329 = vadd.f32 %v2244, %v2302
    %v2330 = vadd.f32 %v2245, %v2306
    %v2331 = vadd.f32 %v2246, %v2294
    %v2332 = vadd.f32 %v2247, %v2298
    %v2333 = vadd.f32 %v2248, %v2302
    %v2334 = vadd.f32 %v2249, %v2306
    %v2335 = vadd.f32 %v2250, %v2294
    %v2336 = vadd.f32 %v2251, %v2298
    %v2337 = vadd.f32 %v2252, %v2302
    %v2338 = vadd.f32 %v2253, %v2306
    %v2339 = vadd.f32 %v2254, %v2294
    %v2340 = vadd.f32 %v2255, %v2298
    %v2341 = vadd.f32 %v2256, %v2302
    %v2342 = vadd.f32 %v2257, %v2306
    %v2343 = vadd.f32 %v2258, %v2294
    %v2344 = vadd.f32 %v2259, %v2298
    %v2345 = vadd.f32 %v2260, %v2302
    %v2346 = vadd.f32 %v2261, %v2306
    %v2347 = vadd.f32 %v2262, %v2294
    %v2348 = vadd.f32 %v2263, %v2298
    %v2349 = vadd.f32 %v2264, %v2302
    %v2350 = vadd.f32 %v2265, %v2306
    %v2351 = vadd.f32 %v2266, %v2294
    %v2352 = vadd.f32 %v2267, %v2298
    %v2353 = vadd.f32 %v2268, %v2302
    %v2354 = vadd.f32 %v2269, %v2306
    %v2355 = vadd.f32 %v2270, %v2294
    %v2356 = vadd.f32 %v2271, %v2298
    %v2357 = vadd.f32 %v2272, %v2302
    %v2358 = vadd.f32 %v2273, %v2306
    %v2359 = vadd.f32 %v2274, %v2294
    %v2360 = vadd.f32 %v2275, %v2298
    %v2361 = vadd.f32 %v2276, %v2302
    %v2362 = vadd.f32 %v2277, %v2306
    %v2363 = vadd.f32 %v2278, %v2294
    %v2364 = vadd.f32 %v2279, %v2298
    %v2365 = vadd.f32 %v2280, %v2302
    %v2366 = vadd.f32 %v2281, %v2306
    %v2367 = vadd.f32 %v2282, %v2294
    %v2368 = vadd.f32 %v2283, %v2298
    %v2369 = vadd.f32 %v2284, %v2302
    %v2370 = vadd.f32 %v2285, %v2306
    %v2371 = vadd.f32 %v2286, %v2294
    %v2372 = vadd.f32 %v2287, %v2298
    %v2373 = vadd.f32 %v2288, %v2302
    %v2374 = vadd.f32 %v2289, %v2306
    %v2375 = vmul.f32 %v2311, 0.5
    %v2376 = vmul.f32 %v2312, 0.5
    %v2377 = vmul.f32 %v2313, 0.5
    %v2378 = vmul.f32 %v2314, 0.5
    %v2379 = vmul.f32 %v2315, 0.5
    %v2380 = vmul.f32 %v2316, 0.5
    %v2381 = vmul.f32 %v2317, 0.5
    %v2382 = vmul.f32 %v2318, 0.5
    %v2383 = vmul.f32 %v2319, 0.5
    %v2384 = vmul.f32 %v2320, 0.5
    %v2385 = vmul.f32 %v2321, 0.5
    %v2386 = vmul.f32 %v2322, 0.5
    %v2387 = vmul.f32 %v2323, 0.5
    %v2388 = vmul.f32 %v2324, 0.5
    %v2389 = vmul.f32 %v2325, 0.5
    %v2390 = vmul.f32 %v2326, 0.5
    %v2391 = vmul.f32 %v2327, 0.5
    %v2392 = vmul.f32 %v2328, 0.5
    %v2393 = vmul.f32 %v2329, 0.5
    %v2394 = vmul.f32 %v2330, 0.5
    %v2395 = vmul.f32 %v2331, 0.5
    %v2396 = vmul.f32 %v2332, 0.5
    %v2397 = vmul.f32 %v2333, 0.5
    %v2398 = vmul.f32 %v2334, 0.5
    %v2399 = vmul.f32 %v2335, 0.5
    %v2400 = vmul.f32 %v2336, 0.5
    %v2401 = vmul.f32 %v2337, 0.5
    %v2402 = vmul.f32 %v2338, 0.5
    %v2403 = vmul.f32 %v2339, 0.5
    %v2404 = vmul.f32 %v2340, 0.5
    %v2405 = vmul.f32 %v2341, 0.5
    %v2406 = vmul.f32 %v2342, 0.5
    %v2407 = vmul.f32 %v2343, 0.5
    %v2408 = vmul.f32 %v2344, 0.5
    %v2409 = vmul.f32 %v2345, 0.5
    %v2410 = vmul.f32 %v2346, 0.5
    %v2411 = vmul.f32 %v2347, 0.5
    %v2412 = vmul.f32 %v2348, 0.5
    %v2413 = vmul.f32 %v2349, 0.5
    %v2414 = vmul.f32 %v2350, 0.5
    %v2415 = vmul.f32 %v2351, 0.5
    %v2416 = vmul.f32 %v2352, 0.5
    %v2417 = vmul.f32 %v2353, 0.5
    %v2418 = vmul.f32 %v2354, 0.5
    %v2419 = vmul.f32 %v2355, 0.5
    %v2420 = vmul.f32 %v2356, 0.5
    %v2421 = vmul.f32 %v2357, 0.5
    %v2422 = vmul.f32 %v2358, 0.5
    %v2423 = vmul.f32 %v2359, 0.5
    %v2424 = vmul.f32 %v2360, 0.5
    %v2425 = vmul.f32 %v2361, 0.5
    %v2426 = vmul.f32 %v2362, 0.5
    %v2427 = vmul.f32 %v2363, 0.5
    %v2428 = vmul.f32 %v2364, 0.5
    %v2429 = vmul.f32 %v2365, 0.5
    %v2430 = vmul.f32 %v2366, 0.5
    %v2431 = vmul.f32 %v2367, 0.5
    %v2432 = vmul.f32 %v2368, 0.5
    %v2433 = vmul.f32 %v2369, 0.5
    %v2434 = vmul.f32 %v2370, 0.5
    %v2435 = vmul.f32 %v2371, 0.5
    %v2436 = vmul.f32 %v2372, 0.5
    %v2437 = vmul.f32 %v2373, 0.5
    %v2438 = vmul.f32 %v2374, 0.5
    %v2439 = vtanh.pop %v2375
    %v2440 = vtanh.pop %v2376
    %v2441 = vtanh.pop %v2377
    %v2442 = vtanh.pop %v2378
    %v2443 = vtanh.pop %v2379
    %v2444 = vtanh.pop %v2380
    %v2445 = vtanh.pop %v2381
    %v2446 = vtanh.pop %v2382
    %v2447 = vtanh.pop %v2383
    %v2448 = vtanh.pop %v2384
    %v2449 = vtanh.pop %v2385
    %v2450 = vtanh.pop %v2386
    %v2451 = vtanh.pop %v2387
    %v2452 = vtanh.pop %v2388
    %v2453 = vtanh.pop %v2389
    %v2454 = vtanh.pop %v2390
    %v2455 = vtanh.pop %v2391
    %v2456 = vtanh.pop %v2392
    %v2457 = vtanh.pop %v2393
    %v2458 = vtanh.pop %v2394
    %v2459 = vtanh.pop %v2395
    %v2460 = vtanh.pop %v2396
    %v2461 = vtanh.pop %v2397
    %v2462 = vtanh.pop %v2398
    %v2463 = vtanh.pop %v2399
    %v2464 = vtanh.pop %v2400
    %v2465 = vtanh.pop %v2401
    %v2466 = vtanh.pop %v2402
    %v2467 = vtanh.pop %v2403
    %v2468 = vtanh.pop %v2404
    %v2469 = vtanh.pop %v2405
    %v2470 = vtanh.pop %v2406
    %v2471 = vtanh.pop %v2407
    %v2472 = vtanh.pop %v2408
    %v2473 = vtanh.pop %v2409
    %v2474 = vtanh.pop %v2410
    %v2475 = vtanh.pop %v2411
    %v2476 = vtanh.pop %v2412
    %v2477 = vtanh.pop %v2413
    %v2478 = vtanh.pop %v2414
    %v2479 = vtanh.pop %v2415
    %v2480 = vtanh.pop %v2416
    %v2481 = vtanh.pop %v2417
    %v2482 = vtanh.pop %v2418
    %v2483 = vtanh.pop %v2419
    %v2484 = vtanh.pop %v2420
    %v2485 = vtanh.pop %v2421
    %v2486 = vtanh.pop %v2422
    %v2487 = vtanh.pop %v2423
    %v2488 = vtanh.pop %v2424
    %v2489 = vtanh.pop %v2425
    %v2490 = vtanh.pop %v2426
    %v2491 = vtanh.pop %v2427
    %v2492 = vtanh.pop %v2428
    %v2493 = vtanh.pop %v2429
    %v2494 = vtanh.pop %v2430
    %v2495 = vtanh.pop %v2431
    %v2496 = vtanh.pop %v2432
    %v2497 = vtanh.pop %v2433
    %v2498 = vtanh.pop %v2434
    %v2499 = vtanh.pop %v2435
    %v2500 = vtanh.pop %v2436
    %v2501 = vtanh.pop %v2437
    %v2502 = vtanh.pop %v2438
    %v2503 = vmul.f32 %v2439, 0.5
    %v2504 = vmul.f32 %v2440, 0.5
    %v2505 = vmul.f32 %v2441, 0.5
    %v2506 = vmul.f32 %v2442, 0.5
    %v2507 = vmul.f32 %v2443, 0.5
    %v2508 = vmul.f32 %v2444, 0.5
    %v2509 = vmul.f32 %v2445, 0.5
    %v2510 = vmul.f32 %v2446, 0.5
    %v2511 = vmul.f32 %v2447, 0.5
    %v2512 = vmul.f32 %v2448, 0.5
    %v2513 = vmul.f32 %v2449, 0.5
    %v2514 = vmul.f32 %v2450, 0.5
    %v2515 = vmul.f32 %v2451, 0.5
    %v2516 = vmul.f32 %v2452, 0.5
    %v2517 = vmul.f32 %v2453, 0.5
    %v2518 = vmul.f32 %v2454, 0.5
    %v2519 = vmul.f32 %v2455, 0.5
    %v2520 = vmul.f32 %v2456, 0.5
    %v2521 = vmul.f32 %v2457, 0.5
    %v2522 = vmul.f32 %v2458, 0.5
    %v2523 = vmul.f32 %v2459, 0.5
    %v2524 = vmul.f32 %v2460, 0.5
    %v2525 = vmul.f32 %v2461, 0.5
    %v2526 = vmul.f32 %v2462, 0.5
    %v2527 = vmul.f32 %v2463, 0.5
    %v2528 = vmul.f32 %v2464, 0.5
    %v2529 = vmul.f32 %v2465, 0.5
    %v2530 = vmul.f32 %v2466, 0.5
    %v2531 = vmul.f32 %v2467, 0.5
    %v2532 = vmul.f32 %v2468, 0.5
    %v2533 = vmul.f32 %v2469, 0.5
    %v2534 = vmul.f32 %v2470, 0.5
    %v2535 = vmul.f32 %v2471, 0.5
    %v2536 = vmul.f32 %v2472, 0.5
    %v2537 = vmul.f32 %v2473, 0.5
    %v2538 = vmul.f32 %v2474, 0.5
    %v2539 = vmul.f32 %v2475, 0.5
    %v2540 = vmul.f32 %v2476, 0.5
    %v2541 = vmul.f32 %v2477, 0.5
    %v2542 = vmul.f32 %v2478, 0.5
    %v2543 = vmul.f32 %v2479, 0.5
    %v2544 = vmul.f32 %v2480, 0.5
    %v2545 = vmul.f32 %v2481, 0.5
    %v2546 = vmul.f32 %v2482, 0.5
    %v2547 = vmul.f32 %v2483, 0.5
    %v2548 = vmul.f32 %v2484, 0.5
    %v2549 = vmul.f32 %v2485, 0.5
    %v2550 = vmul.f32 %v2486, 0.5
    %v2551 = vmul.f32 %v2487, 0.5
    %v2552 = vmul.f32 %v2488, 0.5
    %v2553 = vmul.f32 %v2489, 0.5
    %v2554 = vmul.f32 %v2490, 0.5
    %v2555 = vmul.f32 %v2491, 0.5
    %v2556 = vmul.f32 %v2492, 0.5
    %v2557 = vmul.f32 %v2493, 0.5
    %v2558 = vmul.f32 %v2494, 0.5
    %v2559 = vmul.f32 %v2495, 0.5
    %v2560 = vmul.f32 %v2496, 0.5
    %v2561 = vmul.f32 %v2497, 0.5
    %v2562 = vmul.f32 %v2498, 0.5
    %v2563 = vmul.f32 %v2499, 0.5
    %v2564 = vmul.f32 %v2500, 0.5
    %v2565 = vmul.f32 %v2501, 0.5
    %v2566 = vmul.f32 %v2502, 0.5
    %v2567 = vadd.f32 %v2503, 0.5
    %v2568 = vadd.f32 %v2504, 0.5
    %v2569 = vadd.f32 %v2505, 0.5
    %v2570 = vadd.f32 %v2506, 0.5
    %v2571 = vadd.f32 %v2507, 0.5
    %v2572 = vadd.f32 %v2508, 0.5
    %v2573 = vadd.f32 %v2509, 0.5
    %v2574 = vadd.f32 %v2510, 0.5
    %v2575 = vadd.f32 %v2511, 0.5
    %v2576 = vadd.f32 %v2512, 0.5
    %v2577 = vadd.f32 %v2513, 0.5
    %v2578 = vadd.f32 %v2514, 0.5
    %v2579 = vadd.f32 %v2515, 0.5
    %v2580 = vadd.f32 %v2516, 0.5
    %v2581 = vadd.f32 %v2517, 0.5
    %v2582 = vadd.f32 %v2518, 0.5
    %v2583 = vadd.f32 %v2519, 0.5
    %v2584 = vadd.f32 %v2520, 0.5
    %v2585 = vadd.f32 %v2521, 0.5
    %v2586 = vadd.f32 %v2522, 0.5
    %v2587 = vadd.f32 %v2523, 0.5
    %v2588 = vadd.f32 %v2524, 0.5
    %v2589 = vadd.f32 %v2525, 0.5
    %v2590 = vadd.f32 %v2526, 0.5
    %v2591 = vadd.f32 %v2527, 0.5
    %v2592 = vadd.f32 %v2528, 0.5
    %v2593 = vadd.f32 %v2529, 0.5
    %v2594 = vadd.f32 %v2530, 0.5
    %v2595 = vadd.f32 %v2531, 0.5
    %v2596 = vadd.f32 %v2532, 0.5
    %v2597 = vadd.f32 %v2533, 0.5
    %v2598 = vadd.f32 %v2534, 0.5
    %v2599 = vadd.f32 %v2535, 0.5
    %v2600 = vadd.f32 %v2536, 0.5
    %v2601 = vadd.f32 %v2537, 0.5
    %v2602 = vadd.f32 %v2538, 0.5
    %v2603 = vadd.f32 %v2539, 0.5
    %v2604 = vadd.f32 %v2540, 0.5
    %v2605 = vadd.f32 %v2541, 0.5
    %v2606 = vadd.f32 %v2542, 0.5
    %v2607 = vadd.f32 %v2543, 0.5
    %v2608 = vadd.f32 %v2544, 0.5
    %v2609 = vadd.f32 %v2545, 0.5
    %v2610 = vadd.f32 %v2546, 0.5
    %v2611 = vadd.f32 %v2547, 0.5
    %v2612 = vadd.f32 %v2548, 0.5
    %v2613 = vadd.f32 %v2549, 0.5
    %v2614 = vadd.f32 %v2550, 0.5
    %v2615 = vadd.f32 %v2551, 0.5
    %v2616 = vadd.f32 %v2552, 0.5
    %v2617 = vadd.f32 %v2553, 0.5
    %v2618 = vadd.f32 %v2554, 0.5
    %v2619 = vadd.f32 %v2555, 0.5
    %v2620 = vadd.f32 %v2556, 0.5
    %v2621 = vadd.f32 %v2557, 0.5
    %v2622 = vadd.f32 %v2558, 0.5
    %v2623 = vadd.f32 %v2559, 0.5
    %v2624 = vadd.f32 %v2560, 0.5
    %v2625 = vadd.f32 %v2561, 0.5
    %v2626 = vadd.f32 %v2562, 0.5
    %v2627 = vadd.f32 %v2563, 0.5
    %v2628 = vadd.f32 %v2564, 0.5
    %v2629 = vadd.f32 %v2565, 0.5
    %v2630 = vadd.f32 %v2566, 0.5
    %v2631 = vpack.c.bf16 %v2571, %v2567
    %v2632 = vpack.c.bf16 %v2572, %v2568
    %v2633 = vpack.c.bf16 %v2573, %v2569
    %v2634 = vpack.c.bf16 %v2574, %v2570
    %v2635 = vpack.c.bf16 %v2579, %v2575
    %v2636 = vpack.c.bf16 %v2580, %v2576
    %v2637 = vpack.c.bf16 %v2581, %v2577
    %v2638 = vpack.c.bf16 %v2582, %v2578
    %v2639 = vpack.c.bf16 %v2587, %v2583
    %v2640 = vpack.c.bf16 %v2588, %v2584
    %v2641 = vpack.c.bf16 %v2589, %v2585
    %v2642 = vpack.c.bf16 %v2590, %v2586
    %v2643 = vpack.c.bf16 %v2595, %v2591
    %v2644 = vpack.c.bf16 %v2596, %v2592
    %v2645 = vpack.c.bf16 %v2597, %v2593
    %v2646 = vpack.c.bf16 %v2598, %v2594
    %v2647 = vpack.c.bf16 %v2603, %v2599
    %v2648 = vpack.c.bf16 %v2604, %v2600
    %v2649 = vpack.c.bf16 %v2605, %v2601
    %v2650 = vpack.c.bf16 %v2606, %v2602
    %v2651 = vpack.c.bf16 %v2611, %v2607
    %v2652 = vpack.c.bf16 %v2612, %v2608
    %v2653 = vpack.c.bf16 %v2613, %v2609
    %v2654 = vpack.c.bf16 %v2614, %v2610
    %v2655 = vpack.c.bf16 %v2619, %v2615
    %v2656 = vpack.c.bf16 %v2620, %v2616
    %v2657 = vpack.c.bf16 %v2621, %v2617
    %v2658 = vpack.c.bf16 %v2622, %v2618
    %v2659 = vpack.c.bf16 %v2627, %v2623
    %v2660 = vpack.c.bf16 %v2628, %v2624
    %v2661 = vpack.c.bf16 %v2629, %v2625
    %v2662 = vpack.c.bf16 %v2630, %v2626
    %s2663 = smul.u32 4, 64
    %s2664 = smul.u32 %s2663, 1
    %s2665 = sshll.u32 %s2664, 4
    %2666 = dma.done %s97, %s2665
    %v2667 = vld [vmem:[#allocation3] sm:$0xff]
    %v2668 = vld [vmem:[#allocation3 + $0x8] sm:$0xff]
    %v2669 = vld [vmem:[#allocation3 + $0x10] sm:$0xff]
    %v2670 = vld [vmem:[#allocation3 + $0x18] sm:$0xff]
    %v2671 = vld [vmem:[#allocation3 + $0x20] sm:$0xff]
    %v2672 = vld [vmem:[#allocation3 + $0x28] sm:$0xff]
    %v2673 = vld [vmem:[#allocation3 + $0x30] sm:$0xff]
    %v2674 = vld [vmem:[#allocation3 + $0x38] sm:$0xff]
    %v2675 = vld [vmem:[#allocation3 + $0x40] sm:$0xff]
    %v2676 = vld [vmem:[#allocation3 + $0x48] sm:$0xff]
    %v2677 = vld [vmem:[#allocation3 + $0x50] sm:$0xff]
    %v2678 = vld [vmem:[#allocation3 + $0x58] sm:$0xff]
    %v2679 = vld [vmem:[#allocation3 + $0x60] sm:$0xff]
    %v2680 = vld [vmem:[#allocation3 + $0x68] sm:$0xff]
    %v2681 = vld [vmem:[#allocation3 + $0x70] sm:$0xff]
    %v2682 = vld [vmem:[#allocation3 + $0x78] sm:$0xff]
    %v2683 = vld [vmem:[#allocation3 + $0x80] sm:$0xff]
    %v2684 = vld [vmem:[#allocation3 + $0x88] sm:$0xff]
    %v2685 = vld [vmem:[#allocation3 + $0x90] sm:$0xff]
    %v2686 = vld [vmem:[#allocation3 + $0x98] sm:$0xff]
    %v2687 = vld [vmem:[#allocation3 + $0xa0] sm:$0xff]
    %v2688 = vld [vmem:[#allocation3 + $0xa8] sm:$0xff]
    %v2689 = vld [vmem:[#allocation3 + $0xb0] sm:$0xff]
    %v2690 = vld [vmem:[#allocation3 + $0xb8] sm:$0xff]
    %v2691 = vld [vmem:[#allocation3 + $0xc0] sm:$0xff]
    %v2692 = vld [vmem:[#allocation3 + $0xc8] sm:$0xff]
    %v2693 = vld [vmem:[#allocation3 + $0xd0] sm:$0xff]
    %v2694 = vld [vmem:[#allocation3 + $0xd8] sm:$0xff]
    %v2695 = vld [vmem:[#allocation3 + $0xe0] sm:$0xff]
    %v2696 = vld [vmem:[#allocation3 + $0xe8] sm:$0xff]
    %v2697 = vld [vmem:[#allocation3 + $0xf0] sm:$0xff]
    %v2698 = vld [vmem:[#allocation3 + $0xf8] sm:$0xff]
    %v2700 = vlaneseq
    %v2701 = vshrl.u32 %v2700, 7
    %v2702 = vsub.s32 0, %v2701
    %v2703 = vrot.slane %v115, %v2702
    %2705 = vmatprep.subr.bf16.mxu0 0
    %2706 = vmatpush1.bf16.msra.mxu0 %v2667
    %2707 = vmatprep.subr.bf16.mxu0 0
    %2708 = vmatpush1.bf16.msra.mxu0 %v2668
    %2709 = vmatprep.subr.bf16.mxu0 0
    %2710 = vmatpush1.bf16.msra.mxu0 %v2669
    %2711 = vmatprep.subr.bf16.mxu0 0
    %2712 = vmatpush1.bf16.msra.mxu0 %v2670
    %2713 = vmatprep.subr.bf16.mxu0 0
    %2714 = vmatpush1.bf16.msra.mxu0 %v2671
    %2715 = vmatprep.subr.bf16.mxu0 0
    %2716 = vmatpush1.bf16.msra.mxu0 %v2672
    %2717 = vmatprep.subr.bf16.mxu0 0
    %2718 = vmatpush1.bf16.msra.mxu0 %v2673
    %2719 = vmatprep.subr.bf16.mxu0 0
    %2720 = vmatpush1.bf16.msra.mxu0 %v2674
    %2721 = vmatprep.subr.bf16.mxu0 0
    %2722 = vmatpush1.bf16.msra.mxu0 %v2675
    %2723 = vmatprep.subr.bf16.mxu0 0
    %2724 = vmatpush1.bf16.msra.mxu0 %v2676
    %2725 = vmatprep.subr.bf16.mxu0 0
    %2726 = vmatpush1.bf16.msra.mxu0 %v2677
    %2727 = vmatprep.subr.bf16.mxu0 0
    %2728 = vmatpush1.bf16.msra.mxu0 %v2678
    %2729 = vmatprep.subr.bf16.mxu0 0
    %2730 = vmatpush1.bf16.msra.mxu0 %v2679
    %2731 = vmatprep.subr.bf16.mxu0 0
    %2732 = vmatpush1.bf16.msra.mxu0 %v2680
    %2733 = vmatprep.subr.bf16.mxu0 0
    %2734 = vmatpush1.bf16.msra.mxu0 %v2681
    %2735 = vmatprep.subr.bf16.mxu0 0
    %2736 = vmatpush1.bf16.msra.mxu0 %v2682
    %2737 = vmatprep.mubr.bf16.mxu0 %v2632
    %2738 = vmatmul.mubr.bf16.gmra.mrb[0].mxu0 %v2631
    %v2739 = vpop.f32.mrb[0].mxu0
    %v2740 = vadd.f32 %v2703, %v2739
    %v2741 = vpop.f32.mrb[0].mxu0
    %v2742 = vpop.f32.mrb[0].mxu0
    %v2743 = vadd.f32 %v2703, %v2742
    %v2744 = vpop.f32.mrb[0].mxu0
    %2745 = vmatprep.mubr.bf16.mxu0 %v2636
    %2746 = vmatmul.mubr.bf16.gmra.mrb[0].mxu0 %v2635
    %v2747 = vpop.f32.mrb[0].mxu0
    %v2748 = vadd.f32 %v2703, %v2747
    %v2749 = vpop.f32.mrb[0].mxu0
    %v2750 = vpop.f32.mrb[0].mxu0
    %v2751 = vadd.f32 %v2703, %v2750
    %v2752 = vpop.f32.mrb[0].mxu0
    %2753 = vmatprep.mubr.bf16.mxu0 %v2640
    %2754 = vmatmul.mubr.bf16.gmra.mrb[0].mxu0 %v2639
    %v2755 = vpop.f32.mrb[0].mxu0
    %v2756 = vadd.f32 %v2703, %v2755
    %v2757 = vpop.f32.mrb[0].mxu0
    %v2758 = vpop.f32.mrb[0].mxu0
    %v2759 = vadd.f32 %v2703, %v2758
    %v2760 = vpop.f32.mrb[0].mxu0
    %2761 = vmatprep.mubr.bf16.mxu0 %v2644
    %2762 = vmatmul.mubr.bf16.gmra.mrb[0].mxu0 %v2643
    %v2763 = vpop.f32.mrb[0].mxu0
    %v2764 = vadd.f32 %v2703, %v2763
    %v2765 = vpop.f32.mrb[0].mxu0
    %v2766 = vpop.f32.mrb[0].mxu0
    %v2767 = vadd.f32 %v2703, %v2766
    %v2768 = vpop.f32.mrb[0].mxu0
    %2769 = vmatprep.mubr.bf16.mxu0 %v2648
    %2770 = vmatmul.mubr.bf16.gmra.mrb[0].mxu0 %v2647
    %v2771 = vpop.f32.mrb[0].mxu0
    %v2772 = vadd.f32 %v2703, %v2771
    %v2773 = vpop.f32.mrb[0].mxu0
    %v2774 = vpop.f32.mrb[0].mxu0
    %v2775 = vadd.f32 %v2703, %v2774
    %v2776 = vpop.f32.mrb[0].mxu0
    %2777 = vmatprep.mubr.bf16.mxu0 %v2652
    %2778 = vmatmul.mubr.bf16.gmra.mrb[0].mxu0 %v2651
    %v2779 = vpop.f32.mrb[0].mxu0
    %v2780 = vadd.f32 %v2703, %v2779
    %v2781 = vpop.f32.mrb[0].mxu0
    %v2782 = vpop.f32.mrb[0].mxu0
    %v2783 = vadd.f32 %v2703, %v2782
    %v2784 = vpop.f32.mrb[0].mxu0
    %2785 = vmatprep.mubr.bf16.mxu0 %v2656
    %2786 = vmatmul.mubr.bf16.gmra.mrb[0].mxu0 %v2655
    %v2787 = vpop.f32.mrb[0].mxu0
    %v2788 = vadd.f32 %v2703, %v2787
    %v2789 = vpop.f32.mrb[0].mxu0
    %v2790 = vpop.f32.mrb[0].mxu0
    %v2791 = vadd.f32 %v2703, %v2790
    %v2792 = vpop.f32.mrb[0].mxu0
    %2793 = vmatprep.mubr.bf16.mxu0 %v2660
    %2794 = vmatmul.mubr.bf16.gmra.mrb[0].mxu0 %v2659
    %v2795 = vpop.f32.mrb[0].mxu0
    %v2796 = vadd.f32 %v2703, %v2795
    %v2797 = vpop.f32.mrb[0].mxu0
    %v2798 = vpop.f32.mrb[0].mxu0
    %v2799 = vadd.f32 %v2703, %v2798
    %v2800 = vpop.f32.mrb[0].mxu0
    %2801 = vdwg.mxu0
    %2802 = vmatprep.subr.bf16.mxu0 0
    %2803 = vmatpush1.bf16.msra.mxu0 %v2683
    %2804 = vmatprep.subr.bf16.mxu0 0
    %2805 = vmatpush1.bf16.msra.mxu0 %v2684
    %2806 = vmatprep.subr.bf16.mxu0 0
    %2807 = vmatpush1.bf16.msra.mxu0 %v2685
    %2808 = vmatprep.subr.bf16.mxu0 0
    %2809 = vmatpush1.bf16.msra.mxu0 %v2686
    %2810 = vmatprep.subr.bf16.mxu0 0
    %2811 = vmatpush1.bf16.msra.mxu0 %v2687
    %2812 = vmatprep.subr.bf16.mxu0 0
    %2813 = vmatpush1.bf16.msra.mxu0 %v2688
    %2814 = vmatprep.subr.bf16.mxu0 0
    %2815 = vmatpush1.bf16.msra.mxu0 %v2689
    %2816 = vmatprep.subr.bf16.mxu0 0
    %2817 = vmatpush1.bf16.msra.mxu0 %v2690
    %2818 = vmatprep.subr.bf16.mxu0 0
    %2819 = vmatpush1.bf16.msra.mxu0 %v2691
    %2820 = vmatprep.subr.bf16.mxu0 0
    %2821 = vmatpush1.bf16.msra.mxu0 %v2692
    %2822 = vmatprep.subr.bf16.mxu0 0
    %2823 = vmatpush1.bf16.msra.mxu0 %v2693
    %2824 = vmatprep.subr.bf16.mxu0 0
    %2825 = vmatpush1.bf16.msra.mxu0 %v2694
    %2826 = vmatprep.subr.bf16.mxu0 0
    %2827 = vmatpush1.bf16.msra.mxu0 %v2695
    %2828 = vmatprep.subr.bf16.mxu0 0
    %2829 = vmatpush1.bf16.msra.mxu0 %v2696
    %2830 = vmatprep.subr.bf16.mxu0 0
    %2831 = vmatpush1.bf16.msra.mxu0 %v2697
    %2832 = vmatprep.subr.bf16.mxu0 0
    %2833 = vmatpush1.bf16.msra.mxu0 %v2698
    %2834 = vmatprep.mubr.bf16.mxu0 %v2634
    %2835 = vmatmul.mubr.bf16.gmra.mrb[0].mxu0 %v2633
    %v2836 = vpop.f32.mrb[0].mxu0
    %v2837 = vadd.f32 %v2740, %v2836
    %v2838 = vpop.f32.mrb[0].mxu0
    %v2839 = vpop.f32.mrb[0].mxu0
    %v2840 = vadd.f32 %v2743, %v2839
    %v2841 = vpop.f32.mrb[0].mxu0
    %2842 = vmatprep.mubr.bf16.mxu0 %v2638
    %2843 = vmatmul.mubr.bf16.gmra.mrb[0].mxu0 %v2637
    %v2844 = vpop.f32.mrb[0].mxu0
    %v2845 = vadd.f32 %v2748, %v2844
    %v2846 = vpop.f32.mrb[0].mxu0
    %v2847 = vpop.f32.mrb[0].mxu0
    %v2848 = vadd.f32 %v2751, %v2847
    %v2849 = vpop.f32.mrb[0].mxu0
    %2850 = vmatprep.mubr.bf16.mxu0 %v2642
    %2851 = vmatmul.mubr.bf16.gmra.mrb[0].mxu0 %v2641
    %v2852 = vpop.f32.mrb[0].mxu0
    %v2853 = vadd.f32 %v2756, %v2852
    %v2854 = vpop.f32.mrb[0].mxu0
    %v2855 = vpop.f32.mrb[0].mxu0
    %v2856 = vadd.f32 %v2759, %v2855
    %v2857 = vpop.f32.mrb[0].mxu0
    %2858 = vmatprep.mubr.bf16.mxu0 %v2646
    %2859 = vmatmul.mubr.bf16.gmra.mrb[0].mxu0 %v2645
    %v2860 = vpop.f32.mrb[0].mxu0
    %v2861 = vadd.f32 %v2764, %v2860
    %v2862 = vpop.f32.mrb[0].mxu0
    %v2863 = vpop.f32.mrb[0].mxu0
    %v2864 = vadd.f32 %v2767, %v2863
    %v2865 = vpop.f32.mrb[0].mxu0
    %2866 = vmatprep.mubr.bf16.mxu0 %v2650
    %2867 = vmatmul.mubr.bf16.gmra.mrb[0].mxu0 %v2649
    %v2868 = vpop.f32.mrb[0].mxu0
    %v2869 = vadd.f32 %v2772, %v2868
    %v2870 = vpop.f32.mrb[0].mxu0
    %v2871 = vpop.f32.mrb[0].mxu0
    %v2872 = vadd.f32 %v2775, %v2871
    %v2873 = vpop.f32.mrb[0].mxu0
    %2874 = vmatprep.mubr.bf16.mxu0 %v2654
    %2875 = vmatmul.mubr.bf16.gmra.mrb[0].mxu0 %v2653
    %v2876 = vpop.f32.mrb[0].mxu0
    %v2877 = vadd.f32 %v2780, %v2876
    %v2878 = vpop.f32.mrb[0].mxu0
    %v2879 = vpop.f32.mrb[0].mxu0
    %v2880 = vadd.f32 %v2783, %v2879
    %v2881 = vpop.f32.mrb[0].mxu0
    %2882 = vmatprep.mubr.bf16.mxu0 %v2658
    %2883 = vmatmul.mubr.bf16.gmra.mrb[0].mxu0 %v2657
    %v2884 = vpop.f32.mrb[0].mxu0
    %v2885 = vadd.f32 %v2788, %v2884
    %v2886 = vpop.f32.mrb[0].mxu0
    %v2887 = vpop.f32.mrb[0].mxu0
    %v2888 = vadd.f32 %v2791, %v2887
    %v2889 = vpop.f32.mrb[0].mxu0
    %2890 = vmatprep.mubr.bf16.mxu0 %v2662
    %2891 = vmatmul.mubr.bf16.gmra.mrb[0].mxu0 %v2661
    %v2892 = vpop.f32.mrb[0].mxu0
    %v2893 = vadd.f32 %v2796, %v2892
    %v2894 = vpop.f32.mrb[0].mxu0
    %v2895 = vpop.f32.mrb[0].mxu0
    %v2896 = vadd.f32 %v2799, %v2895
    %v2897 = vpop.f32.mrb[0].mxu0
    %2898 = vdwg.mxu0
    %2899 = vst [vmem:[#allocation11] sm:$0xff] %v2837
    %2900 = vst [vmem:[#allocation11 + $0x8] sm:$0xff] %v2840
    %2901 = vst [vmem:[#allocation11 + $0x10] sm:$0xff] %v2845
    %2902 = vst [vmem:[#allocation11 + $0x18] sm:$0xff] %v2848
    %2903 = vst [vmem:[#allocation11 + $0x20] sm:$0xff] %v2853
    %2904 = vst [vmem:[#allocation11 + $0x28] sm:$0xff] %v2856
    %2905 = vst [vmem:[#allocation11 + $0x30] sm:$0xff] %v2861
    %2906 = vst [vmem:[#allocation11 + $0x38] sm:$0xff] %v2864
    %2907 = vst [vmem:[#allocation11 + $0x40] sm:$0xff] %v2869
    %2908 = vst [vmem:[#allocation11 + $0x48] sm:$0xff] %v2872
    %2909 = vst [vmem:[#allocation11 + $0x50] sm:$0xff] %v2877
    %2910 = vst [vmem:[#allocation11 + $0x58] sm:$0xff] %v2880
    %2911 = vst [vmem:[#allocation11 + $0x60] sm:$0xff] %v2885
    %2912 = vst [vmem:[#allocation11 + $0x68] sm:$0xff] %v2888
    %2913 = vst [vmem:[#allocation11 + $0x70] sm:$0xff] %v2893
    %2914 = vst [vmem:[#allocation11 + $0x78] sm:$0xff] %v2896
    // Predicated region
    $region34: #{tpu_custom_call.1} parent=1 // pred_check
      _
    $region35: #{tpu_custom_call.1} parent=1 // pred_check_branch
      %2916 = sbr.rel (0) target = $region37
    $region36: #{tpu_custom_call.1} parent=1 // pred_region
      %s2918 = ssub.s32 2048, 2048
      %2919 = vsyncadd [#allocation7], %s2918
      %s2920 = sshll.u32 [#allocation11], 4
      %s2921 = int_to_ptr.vmem [resolvable:$true] %s2920
      %2926 = dma.vmem_to_hbm [thread:$0]  %s2921, 2048, %s6, [#allocation7], 128, 128, 8
    $region37: #{tpu_custom_call.1} parent=1 // pred_fallthru
      _
    // Predicated region
    $region38: #{tpu_custom_call.1} parent=1 // pred_check
      _
    $region39: #{tpu_custom_call.1} parent=1 // pred_check_branch
      %2928 = sbr.rel (0) target = $region41
    $region40: #{tpu_custom_call.1} parent=1 // pred_region
      %2929 = dma.done [#allocation7], 2048
    $region41: #{tpu_custom_call.1} parent=1 // pred_fallthru
      _
    %2930 = vsyncpa [#allocation6], 1
    %2931 = vsyncpa [#allocation9], 1
    %2932 = vsyncpa [#allocation7], 1
  %2933 = vsyncmov [#allocation4]
  %s2934 = vpop.sfrf %2933
  %p2935 = scmp.eq.s32.totalorder %s2934, 0
  %p2936 = pneg %p2935
  %2938 = shalt.err (%p2936)
  %s2939 = scalar_lea.sflag [#allocation4], 1
  %2940 = vsyncmov %s2939
  %s2941 = vpop.sfrf %2940
  %p2942 = scmp.eq.s32.totalorder %s2941, 0
  %p2943 = pneg %p2942
  %2945 = shalt.err (%p2943)

</llo_original>
